<compile_context>
chip_gen: v5e
topology: v5e:2x2
jax: 0.10.0
libtpu: 0.0.40
codegen_flags: <defaults>
</compile_context>

<pallas_src>
import functools
import math

import jax
import jax.numpy as jnp
from jax.experimental import pallas as pl
from jax.experimental.pallas import tpu as pltpu


def _row_block(n):
    if n % 128 == 0:
        return 128
    if n % 8 == 0:
        return 8
    return n


# --------------------------------------------------------------------------- #
# Fused Q/K/V projection: y = x @ W_qkv^T + b_qkv  (W_qkv = [Wq; Wk; Wv])
# --------------------------------------------------------------------------- #
def _qkv_linear_kernel(x_ref, w_ref, b_ref, o_ref):
    x = x_ref[...].astype(jnp.bfloat16)
    w = w_ref[...].astype(jnp.bfloat16)
    y = jnp.dot(x, w, preferred_element_type=jnp.float32)
    y = y + b_ref[...].astype(jnp.float32)
    o_ref[...] = y.astype(o_ref.dtype)


def pallas_qkv_linear(x2d, wqkv_t, bqkv):
    """x2d: (N, d_model); wqkv_t: (d_model, 3*d_model); bqkv: (1, 3*d_model)."""
    N, dm = x2d.shape
    d_out = wqkv_t.shape[1]
    bn = _row_block(N)
    return pl.pallas_call(
        _qkv_linear_kernel,
        out_shape=jax.ShapeDtypeStruct((N, d_out), x2d.dtype),
        grid_spec=pltpu.PrefetchScalarGridSpec(
            num_scalar_prefetch=0,
            grid=(N // bn,),
            in_specs=[
                pl.BlockSpec((bn, dm), lambda i: (i, 0)),
                pl.BlockSpec((dm, d_out), lambda i: (0, 0)),
                pl.BlockSpec((1, d_out), lambda i: (0, 0)),
            ],
            out_specs=pl.BlockSpec((bn, d_out), lambda i: (i, 0)),
        ),
        compiler_params=pltpu.CompilerParams(
            dimension_semantics=("parallel",),
        ),
    )(x2d, wqkv_t, bqkv)


# --------------------------------------------------------------------------- #
# Multi-head scaled-dot-product attention (all heads of one batch per step)
# --------------------------------------------------------------------------- #
def _mha_attention_kernel(q_ref, k_ref, v_ref, mask_ref, o_ref, *, scale):
    # Blocks for one batch element:
    #   q_ref/k_ref/v_ref: (1, H, L, D), mask_ref: (1, L, L), o_ref: (1, L, H*D)
    q = (q_ref[0] * scale).astype(jnp.bfloat16)      # fold 1/sqrt(d) into q: O(L*D)
    k = k_ref[0].astype(jnp.bfloat16)
    v = v_ref[0].astype(jnp.bfloat16)
    mask = mask_ref[0]                               # (L, L) int32

    # score = (q * scale) @ k^T, contracting last dims (no explicit K transpose),
    # batched over heads, fp32 accumulation on the MXU.
    s = jnp.einsum("hqd,hkd->hqk", q, k, preferred_element_type=jnp.float32)
    s = jnp.where(mask[None, :, :] == 0, -10000.0, s)

    # Numerically-stable softmax; normalization deferred past the second matmul.
    m = jnp.max(s, axis=-1, keepdims=True)
    p = jnp.exp(s - m)
    denom = jnp.sum(p, axis=-1, keepdims=True)       # (H, L, 1)

    ctx = jnp.einsum("hqk,hkd->hqd", p.astype(jnp.bfloat16), v,
                     preferred_element_type=jnp.float32)          # (H, L, D)
    ctx = ctx * pl.reciprocal(denom, approx=True)    # EUP reciprocal, O(L*D) normalize

    # Fused "concat": lane-dense (L, H*D) output block.
    H = ctx.shape[0]
    o_ref[0] = jnp.concatenate([ctx[h] for h in range(H)], axis=-1).astype(o_ref.dtype)


def pallas_mha_context(q, k, v, mask):
    """q, k, v: (B, H, L, D) f32; mask: (B, L, L) int32. Returns (B, L, H*D)."""
    # TODO(synk): for large L, replace the full (H, L, L) score tile with a
    # flash-style online-softmax over K/V blocks to bound VMEM (v7x/v5e).
    B, H, L, D = q.shape
    dm = H * D
    scale = 1.0 / math.sqrt(D)
    return pl.pallas_call(
        functools.partial(_mha_attention_kernel, scale=scale),
        out_shape=jax.ShapeDtypeStruct((B, L, dm), q.dtype),
        grid_spec=pltpu.PrefetchScalarGridSpec(
            num_scalar_prefetch=0,
            grid=(B,),
            in_specs=[
                pl.BlockSpec((1, H, L, D), lambda b: (b, 0, 0, 0)),
                pl.BlockSpec((1, H, L, D), lambda b: (b, 0, 0, 0)),
                pl.BlockSpec((1, H, L, D), lambda b: (b, 0, 0, 0)),
                pl.BlockSpec((1, L, L), lambda b: (b, 0, 0)),
            ],
            out_specs=pl.BlockSpec((1, L, dm), lambda b: (b, 0, 0)),
        ),
        compiler_params=pltpu.CompilerParams(
            dimension_semantics=("parallel",),
        ),
    )(q, k, v, mask)


# --------------------------------------------------------------------------- #
# Fused: y = LayerNorm(ctx @ Wc^T + bc + residual)      (w_concat + add + norm1)
# --------------------------------------------------------------------------- #
def _layernorm_f32(y, g, b, eps):
    mean = jnp.mean(y, axis=-1, keepdims=True)
    cent = y - mean
    var = jnp.mean(cent * cent, axis=-1, keepdims=True)
    return g * (cent * jax.lax.rsqrt(var + eps)) + b


def _proj_add_layernorm_kernel(ctx_ref, res_ref, w_ref, b_ref, g_ref, be_ref,
                               o_ref, *, eps):
    ctx = ctx_ref[...].astype(jnp.bfloat16)
    w = w_ref[...].astype(jnp.bfloat16)
    y = jnp.dot(ctx, w, preferred_element_type=jnp.float32)
    y = y + b_ref[...].astype(jnp.float32) + res_ref[...].astype(jnp.float32)
    out = _layernorm_f32(y, g_ref[...].astype(jnp.float32),
                         be_ref[...].astype(jnp.float32), eps)
    o_ref[...] = out.astype(o_ref.dtype)


def pallas_proj_add_layernorm(ctx2d, res2d, wc_t, bc, gamma, beta, *, eps=1e-12):
    N, dm = ctx2d.shape
    bn = _row_block(N)
    return pl.pallas_call(
        functools.partial(_proj_add_layernorm_kernel, eps=eps),
        out_shape=jax.ShapeDtypeStruct((N, dm), ctx2d.dtype),
        grid_spec=pltpu.PrefetchScalarGridSpec(
            num_scalar_prefetch=0,
            grid=(N // bn,),
            in_specs=[
                pl.BlockSpec((bn, dm), lambda i: (i, 0)),
                pl.BlockSpec((bn, dm), lambda i: (i, 0)),
                pl.BlockSpec((dm, dm), lambda i: (0, 0)),
                pl.BlockSpec((1, dm), lambda i: (0, 0)),
                pl.BlockSpec((1, dm), lambda i: (0, 0)),
                pl.BlockSpec((1, dm), lambda i: (0, 0)),
            ],
            out_specs=pl.BlockSpec((bn, dm), lambda i: (i, 0)),
        ),
        compiler_params=pltpu.CompilerParams(
            dimension_semantics=("parallel",),
        ),
    )(ctx2d, res2d, wc_t, bc, gamma, beta)


# --------------------------------------------------------------------------- #
# Fused FFN + residual + LayerNorm:
#   y = LayerNorm(relu(x @ W1^T + b1) @ W2^T + b2 + x)
# --------------------------------------------------------------------------- #
def _ffn_add_layernorm_kernel(x_ref, w1_ref, b1_ref, w2_ref, b2_ref,
                              g_ref, be_ref, o_ref, *, eps):
    x_f32 = x_ref[...].astype(jnp.float32)
    x = x_f32.astype(jnp.bfloat16)
    w1 = w1_ref[...].astype(jnp.bfloat16)
    w2 = w2_ref[...].astype(jnp.bfloat16)

    h = jnp.dot(x, w1, preferred_element_type=jnp.float32)
    h = h + b1_ref[...].astype(jnp.float32)
    h = jnp.maximum(h, 0.0)                                   # ReLU (VPU)

    f = jnp.dot(h.astype(jnp.bfloat16), w2, preferred_element_type=jnp.float32)
    f = f + b2_ref[...].astype(jnp.float32)

    y = f + x_f32                                             # residual add
    out = _layernorm_f32(y, g_ref[...].astype(jnp.float32),
                         be_ref[...].astype(jnp.float32), eps)
    o_ref[...] = out.astype(o_ref.dtype)


def pallas_ffn_add_layernorm(x2d, w1_t, b1, w2_t, b2, gamma, beta, *, eps=1e-12):
    # TODO(synk): for very large ffn_hidden, block the hidden dimension (K-loop
    # with a VMEM accumulator) instead of holding both weight slabs at once.
    N, dm = x2d.shape
    ffn = w1_t.shape[1]
    bn = _row_block(N)
    return pl.pallas_call(
        functools.partial(_ffn_add_layernorm_kernel, eps=eps),
        out_shape=jax.ShapeDtypeStruct((N, dm), x2d.dtype),
        grid_spec=pltpu.PrefetchScalarGridSpec(
            num_scalar_prefetch=0,
            grid=(N // bn,),
            in_specs=[
                pl.BlockSpec((bn, dm), lambda i: (i, 0)),
                pl.BlockSpec((dm, ffn), lambda i: (0, 0)),
                pl.BlockSpec((1, ffn), lambda i: (0, 0)),
                pl.BlockSpec((ffn, dm), lambda i: (0, 0)),
                pl.BlockSpec((1, dm), lambda i: (0, 0)),
                pl.BlockSpec((1, dm), lambda i: (0, 0)),
                pl.BlockSpec((1, dm), lambda i: (0, 0)),
            ],
            out_specs=pl.BlockSpec((bn, dm), lambda i: (i, 0)),
        ),
        compiler_params=pltpu.CompilerParams(
            dimension_semantics=("parallel",),
        ),
    )(x2d, w1_t, b1, w2_t, b2, gamma, beta)


# --------------------------------------------------------------------------- #
# EncoderLayer forward
# --------------------------------------------------------------------------- #
def _normalize_mask(mask, B, L):
    if mask is None:
        return jnp.ones((B, L, L), dtype=jnp.int32)
    m = jnp.asarray(mask).astype(jnp.int32)
    if m.ndim == 4:          # (B, 1, Lq|1, Lk): drop the head axis
        m = m[:, 0]
    if m.ndim == 2:          # (B, Lk): key-padding mask
        m = m[:, None, :]
    return jnp.broadcast_to(m, (B, L, L))


@functools.partial(jax.jit, static_argnames=("n_head",))
def encoder_layer_forward(x, src_mask, params, *, n_head):
    """EncoderLayer.forward (inference). x: (B, L, d_model)."""
    B, L, dm = x.shape
    H = n_head
    D = dm // H
    mask = _normalize_mask(src_mask, B, L)
    x2d = x.reshape(B * L, dm)

    # ---- MultiHeadAttention ----
    # Fused Q/K/V projection: one matmul against [Wq; Wk; Wv].
    wqkv_t = jnp.concatenate(
        [params["wq"], params["wk"], params["wv"]], axis=0).T          # (dm, 3*dm)
    bqkv = jnp.concatenate(
        [params["bq"], params["bk"], params["bv"]], axis=0)[None, :]   # (1, 3*dm)
    qkv = pallas_qkv_linear(x2d, wqkv_t, bqkv)                          # (B*L, 3*dm)
    q2d, k2d, v2d = qkv[:, :dm], qkv[:, dm:2 * dm], qkv[:, 2 * dm:]

    def split(t):  # (B*L, d_model) -> (B, H, L, D)
        return t.reshape(B, L, H, D).transpose(0, 2, 1, 3)

    ctx = pallas_mha_context(split(q2d), split(k2d), split(v2d), mask)  # (B, L, dm)

    # TODO(synk): dropout layers are identity (inference mode); training-time
    # dropout is not implemented.
    # w_concat projection + residual + LayerNorm fused.
    x1 = pallas_proj_add_layernorm(
        ctx.reshape(B * L, dm), x2d,
        params["wc"].T, params["bc"][None, :],
        params["ln1_g"][None, :], params["ln1_b"][None, :])

    # ---- PositionwiseFeedForward + residual + LayerNorm fused ----
    out = pallas_ffn_add_layernorm(
        x1,
        params["w1"].T, params["fb1"][None, :],
        params["w2"].T, params["fb2"][None, :],
        params["ln2_g"][None, :], params["ln2_b"][None, :])

    return out.reshape(B, L, dm)


# --------------------------------------------------------------------------- #
# Pure-JAX fp32 reference (mirrors the PyTorch module, eval mode)
# --------------------------------------------------------------------------- #
def _reference_encoder_layer(x, mask_bll, params, n_head, eps=1e-12):
    B, L, dm = x.shape
    H = n_head
    D = dm // H

    def lin(t, w, b):
        return t @ w.T + b

    def layernorm(t, g, b):
        mean = jnp.mean(t, axis=-1, keepdims=True)
        var = jnp.mean((t - mean) ** 2, axis=-1, keepdims=True)
        return g * (t - mean) / jnp.sqrt(var + eps) + b

    q = lin(x, params["wq"], params["bq"])
    k = lin(x, params["wk"], params["bk"])
    v = lin(x, params["wv"], params["bv"])

    def split(t):
        return t.reshape(B, L, H, D).transpose(0, 2, 1, 3)

    qh, kh, vh = split(q), split(k), split(v)
    s = jnp.einsum("bhqd,bhkd->bhqk", qh, kh) / math.sqrt(D)
    s = jnp.where(mask_bll[:, None, :, :] == 0, -10000.0, s)
    attn = jax.nn.softmax(s, axis=-1)
    ctx = jnp.einsum("bhqk,bhkd->bhqd", attn, vh)
    ctx = ctx.transpose(0, 2, 1, 3).reshape(B, L, dm)
    a_out = lin(ctx, params["wc"], params["bc"])
    x1 = layernorm(x + a_out, params["ln1_g"], params["ln1_b"])
    f = jnp.maximum(lin(x1, params["w1"], params["fb1"]), 0.0)
    f = lin(f, params["w2"], params["fb2"])
    return layernorm(x1 + f, params["ln2_g"], params["ln2_b"])


if __name__ == "__main__":
    B, L, d_model, n_head, ffn_hidden = 2, 8, 128, 4, 256

    key = jax.random.PRNGKey(0)
    ks = jax.random.split(key, 13)

    def lin_init(kw, kb, d_out, d_in):
        w = jax.random.normal(kw, (d_out, d_in), jnp.float32) / math.sqrt(d_in)
        b = 0.02 * jax.random.normal(kb, (d_out,), jnp.float32)
        return w, b

    wq, bq = lin_init(ks[0], ks[1], d_model, d_model)
    wk, bk = lin_init(ks[2], ks[3], d_model, d_model)
    wv, bv = lin_init(ks[4], ks[5], d_model, d_model)
    wc, bc = lin_init(ks[6], ks[7], d_model, d_model)
    w1, fb1 = lin_init(ks[8], ks[9], ffn_hidden, d_model)
    w2, fb2 = lin_init(ks[10], ks[11], d_model, ffn_hidden)

    params = dict(
        wq=wq, bq=bq, wk=wk, bk=bk, wv=wv, bv=bv, wc=wc, bc=bc,
        w1=w1, fb1=fb1, w2=w2, fb2=fb2,
        ln1_g=jnp.ones((d_model,), jnp.float32),
        ln1_b=jnp.zeros((d_model,), jnp.float32),
        ln2_g=jnp.ones((d_model,), jnp.float32),
        ln2_b=jnp.zeros((d_model,), jnp.float32),
    )

    x = jax.random.normal(ks[12], (B, L, d_model), jnp.float32)

    # Key-padding src_mask: second sequence has its last 3 keys masked out.
    lengths = jnp.array([L, L - 3], dtype=jnp.int32)
    key_valid = (jnp.arange(L)[None, :] < lengths[:, None]).astype(jnp.int32)  # (B, L)
    src_mask = jnp.broadcast_to(key_valid[:, None, :], (B, L, L)).astype(jnp.int32)

    out = encoder_layer_forward(x, src_mask, params, n_head=n_head)
    out = jax.block_until_ready(out)

    ref = _reference_encoder_layer(x, src_mask, params, n_head)
    assert out.shape == ref.shape
    max_err = float(jnp.max(jnp.abs(out - ref)))
    assert jnp.allclose(out, ref, atol=5e-2, rtol=5e-2), max_err

    print("KERNEL_OK")
</pallas_src>

<mosaic_0001>
module attributes {stable_mosaic.version = 11 : i64} {
  func.func @_qkv_linear_kernel(%arg0: i32, %arg1: memref<8x128xf32, #tpu.memory_space<vmem>>, %arg2: memref<128x384xf32, #tpu.memory_space<vmem>>, %arg3: memref<1x384xf32, #tpu.memory_space<vmem>>, %arg4: memref<8x384xf32, #tpu.memory_space<vmem>>) attributes {dimension_semantics = [#tpu.dimension_semantics<parallel>], iteration_bounds = array<i64: 2>, scalar_prefetch = 0 : i64, scratch_operands = 0 : i64, tpu.core_type = #tpu.core_type<tc>, window_params = [{transform_indices = @transform_0, window_bounds = array<i64: 8, 128>}, {pipeline_mode = #tpu.pipeline_mode<synchronous>, transform_indices = @transform_1, window_bounds = array<i64: 128, 384>}, {pipeline_mode = #tpu.pipeline_mode<synchronous>, transform_indices = @transform_2, window_bounds = array<i64: 1, 384>}, {transform_indices = @transform_3, window_bounds = array<i64: 8, 384>}]} {
    %c0 = arith.constant 0 : index
    %c0_0 = arith.constant 0 : index
    %0 = vector.load %arg1[%c0, %c0_0] : memref<8x128xf32, #tpu.memory_space<vmem>>, vector<8x128xf32>
    %1 = arith.truncf %0 : vector<8x128xf32> to vector<8x128xbf16>
    %c0_1 = arith.constant 0 : index
    %c0_2 = arith.constant 0 : index
    %2 = vector.load %arg2[%c0_1, %c0_2] : memref<128x384xf32, #tpu.memory_space<vmem>>, vector<128x384xf32>
    %3 = arith.truncf %2 : vector<128x384xf32> to vector<128x384xbf16>
    %cst = arith.constant dense<0.000000e+00> : vector<8x384xf32>
    %4 = tpu.matmul %1, %3, %cst {dimension_numbers = #tpu.dot_dimension_numbers<[1], [0], [0], [1], [0, 0, 1, 1], [], []>} : vector<8x128xbf16>, vector<128x384xbf16>, vector<8x384xf32> -> vector<8x384xf32>
    %c0_3 = arith.constant 0 : index
    %c0_4 = arith.constant 0 : index
    %5 = vector.load %arg3[%c0_3, %c0_4] : memref<1x384xf32, #tpu.memory_space<vmem>>, vector<1x384xf32>
    %6 = vector.broadcast %5 : vector<1x384xf32> to vector<8x384xf32>
    %7 = arith.addf %4, %6 : vector<8x384xf32>
    %c0_5 = arith.constant 0 : index
    %c0_6 = arith.constant 0 : index
    %8 = vector.load %arg4[%c0_5, %c0_6] : memref<8x384xf32, #tpu.memory_space<vmem>>, vector<8x384xf32>
    tpu.vector_store %arg4[%c0_5, %c0_6], %7 {strides = array<i32>} : memref<8x384xf32, #tpu.memory_space<vmem>>, vector<8x384xf32>,
    return
  }
  func.func @transform_0(%arg0: i32) -> (i32, i32) {
    %c0_i32 = arith.constant 0 : i32
    %c0_i32_0 = arith.constant 0 : i32
    return %arg0, %c0_i32 : i32, i32
  }
  func.func @transform_1(%arg0: i32) -> (i32, i32) {
    %c0_i32 = arith.constant 0 : i32
    %c0_i32_0 = arith.constant 0 : i32
    %c0_i32_1 = arith.constant 0 : i32
    return %c0_i32, %c0_i32_0 : i32, i32
  }
  func.func @transform_2(%arg0: i32) -> (i32, i32) {
    %c0_i32 = arith.constant 0 : i32
    %c0_i32_0 = arith.constant 0 : i32
    %c0_i32_1 = arith.constant 0 : i32
    return %c0_i32, %c0_i32_0 : i32, i32
  }
  func.func @transform_3(%arg0: i32) -> (i32, i32) {
    %c0_i32 = arith.constant 0 : i32
    %c0_i32_0 = arith.constant 0 : i32
    return %arg0, %c0_i32 : i32, i32
  }
}

module attributes {stable_mosaic.version = 11 : i64} {
  func.func @_mha_attention_kernel(%arg0: i32, %arg1: memref<1x4x8x32xf32, #tpu.memory_space<vmem>>, %arg2: memref<1x4x8x32xf32, #tpu.memory_space<vmem>>, %arg3: memref<1x4x8x32xf32, #tpu.memory_space<vmem>>, %arg4: memref<1x8x8xi32, #tpu.memory_space<vmem>>, %arg5: memref<1x8x128xf32, #tpu.memory_space<vmem>>) attributes {dimension_semantics = [#tpu.dimension_semantics<parallel>], iteration_bounds = array<i64: 2>, scalar_prefetch = 0 : i64, scratch_operands = 0 : i64, tpu.core_type = #tpu.core_type<tc>, window_params = [{transform_indices = @transform_0, window_bounds = array<i64: 1, 4, 8, 32>}, {transform_indices = @transform_1, window_bounds = array<i64: 1, 4, 8, 32>}, {transform_indices = @transform_2, window_bounds = array<i64: 1, 4, 8, 32>}, {transform_indices = @transform_3, window_bounds = array<i64: 1, 8, 8>}, {transform_indices = @transform_4, window_bounds = array<i64: 1, 8, 128>}]} {
    %c0 = arith.constant 0 : index
    %c0_0 = arith.constant 0 : index
    %c0_1 = arith.constant 0 : index
    %c0_2 = arith.constant 0 : index
    %0 = vector.load %arg1[%c0, %c0_0, %c0_1, %c0_2] : memref<1x4x8x32xf32, #tpu.memory_space<vmem>>, vector<1x4x8x32xf32>
    %1 = vector.shape_cast %0 : vector<1x4x8x32xf32> to vector<4x8x32xf32>
    %cst = arith.constant 0.176776692 : f32
    %2 = vector.broadcast %cst : f32 to vector<4x8x32xf32>
    %3 = arith.mulf %1, %2 : vector<4x8x32xf32>
    %4 = arith.truncf %3 : vector<4x8x32xf32> to vector<4x8x32xbf16>
    %c0_3 = arith.constant 0 : index
    %c0_4 = arith.constant 0 : index
    %c0_5 = arith.constant 0 : index
    %c0_6 = arith.constant 0 : index
    %5 = vector.load %arg2[%c0_3, %c0_4, %c0_5, %c0_6] : memref<1x4x8x32xf32, #tpu.memory_space<vmem>>, vector<1x4x8x32xf32>
    %6 = vector.shape_cast %5 : vector<1x4x8x32xf32> to vector<4x8x32xf32>
    %7 = arith.truncf %6 : vector<4x8x32xf32> to vector<4x8x32xbf16>
    %c0_7 = arith.constant 0 : index
    %c0_8 = arith.constant 0 : index
    %c0_9 = arith.constant 0 : index
    %c0_10 = arith.constant 0 : index
    %8 = vector.load %arg3[%c0_7, %c0_8, %c0_9, %c0_10] : memref<1x4x8x32xf32, #tpu.memory_space<vmem>>, vector<1x4x8x32xf32>
    %9 = vector.shape_cast %8 : vector<1x4x8x32xf32> to vector<4x8x32xf32>
    %10 = arith.truncf %9 : vector<4x8x32xf32> to vector<4x8x32xbf16>
    %c0_11 = arith.constant 0 : index
    %c0_12 = arith.constant 0 : index
    %c0_13 = arith.constant 0 : index
    %11 = vector.load %arg4[%c0_11, %c0_12, %c0_13] : memref<1x8x8xi32, #tpu.memory_space<vmem>>, vector<1x8x8xi32>
    %12 = vector.shape_cast %11 : vector<1x8x8xi32> to vector<8x8xi32>
    "tpu.trace_start"() <{level = 10 : i32, message = "hqd,hkd->hqk"}> : () -> ()
    %cst_14 = arith.constant dense<0.000000e+00> : vector<4x8x8xf32>
    %13 = tpu.matmul %4, %7, %cst_14 {dimension_numbers = #tpu.dot_dimension_numbers<[2], [2], [1], [1], [0, 0, 0, 1, 1, 1], [0], [0]>} : vector<4x8x32xbf16>, vector<4x8x32xbf16>, vector<4x8x8xf32> -> vector<4x8x8xf32>
    "tpu.trace_stop"() : () -> ()
    %14 = vector.shape_cast %12 : vector<8x8xi32> to vector<1x8x8xi32>
    %c0_i32 = arith.constant 0 : i32
    %15 = vector.broadcast %c0_i32 : i32 to vector<1x8x8xi32>
    %16 = arith.cmpi eq, %14, %15 : vector<1x8x8xi32>
    %cst_15 = arith.constant -1.000000e+04 : f32
    %17 = vector.shape_cast %16 : vector<1x8x8xi1> to vector<1x8x8xi1>
    %18 = vector.broadcast %17 : vector<1x8x8xi1> to vector<4x8x8xi1>
    %19 = vector.broadcast %cst_15 : f32 to vector<4x8x8xf32>
    %20 = arith.select %18, %19, %13 : vector<4x8x8xi1>, vector<4x8x8xf32>
    %cst_16 = arith.constant dense<0xFF800000> : vector<4x8xf32>
    %21 = vector.multi_reduction <maximumf>, %20, %cst_16 [2] : vector<4x8x8xf32> to vector<4x8xf32>
    %22 = vector.shape_cast %21 : vector<4x8xf32> to vector<4x8x1xf32>
    %23 = vector.broadcast %22 : vector<4x8x1xf32> to vector<4x8x8xf32>
    %24 = arith.subf %20, %23 : vector<4x8x8xf32>
    %25 = math.exp %24 : vector<4x8x8xf32>
    %cst_17 = arith.constant dense<0.000000e+00> : vector<4x8xf32>
    %26 = vector.multi_reduction <add>, %25, %cst_17 [2] : vector<4x8x8xf32> to vector<4x8xf32>
    %27 = vector.shape_cast %26 : vector<4x8xf32> to vector<4x8x1xf32>
    %28 = arith.truncf %25 : vector<4x8x8xf32> to vector<4x8x8xbf16>
    "tpu.trace_start"() <{level = 10 : i32, message = "hqk,hkd->hqd"}> : () -> ()
    %cst_18 = arith.constant dense<0.000000e+00> : vector<4x8x32xf32>
    %29 = tpu.matmul %28, %10, %cst_18 {dimension_numbers = #tpu.dot_dimension_numbers<[2], [1], [1], [2], [0, 0, 0, 1, 1, 2], [0], [0]>} : vector<4x8x8xbf16>, vector<4x8x32xbf16>, vector<4x8x32xf32> -> vector<4x8x32xf32>
    "tpu.trace_stop"() : () -> ()
    %30 = tpu.reciprocal %27 {approx = true} : vector<4x8x1xf32> -> vector<4x8x1xf32>
    %31 = vector.broadcast %30 : vector<4x8x1xf32> to vector<4x8x32xf32>
    %32 = arith.mulf %29, %31 : vector<4x8x32xf32>
    %33 = vector.extract_strided_slice %32 {offsets = [0, 0, 0], sizes = [1, 8, 32], strides = [1, 1, 1]} : vector<4x8x32xf32> to vector<1x8x32xf32>
    %34 = vector.shape_cast %33 : vector<1x8x32xf32> to vector<8x32xf32>
    %35 = vector.extract_strided_slice %32 {offsets = [1, 0, 0], sizes = [1, 8, 32], strides = [1, 1, 1]} : vector<4x8x32xf32> to vector<1x8x32xf32>
    %36 = vector.shape_cast %35 : vector<1x8x32xf32> to vector<8x32xf32>
    %37 = vector.extract_strided_slice %32 {offsets = [2, 0, 0], sizes = [1, 8, 32], strides = [1, 1, 1]} : vector<4x8x32xf32> to vector<1x8x32xf32>
    %38 = vector.shape_cast %37 : vector<1x8x32xf32> to vector<8x32xf32>
    %39 = vector.extract_strided_slice %32 {offsets = [3, 0, 0], sizes = [1, 8, 32], strides = [1, 1, 1]} : vector<4x8x32xf32> to vector<1x8x32xf32>
    %40 = vector.shape_cast %39 : vector<1x8x32xf32> to vector<8x32xf32>
    %41 = tpu.concatenate %34, %36, %38, %40 in 1 : vector<8x32xf32>, vector<8x32xf32>, vector<8x32xf32>, vector<8x32xf32> -> vector<8x128xf32>
    %c0_19 = arith.constant 0 : index
    %c0_20 = arith.constant 0 : index
    %c0_21 = arith.constant 0 : index
    %42 = vector.load %arg5[%c0_19, %c0_20, %c0_21] : memref<1x8x128xf32, #tpu.memory_space<vmem>>, vector<1x8x128xf32>
    %43 = vector.shape_cast %42 : vector<1x8x128xf32> to vector<8x128xf32>
    %44 = vector.shape_cast %41 : vector<8x128xf32> to vector<1x8x128xf32>
    tpu.vector_store %arg5[%c0_19, %c0_20, %c0_21], %44 {strides = array<i32>} : memref<1x8x128xf32, #tpu.memory_space<vmem>>, vector<1x8x128xf32>,
    return
  }
  func.func @transform_0(%arg0: i32) -> (i32, i32, i32, i32) {
    %c0_i32 = arith.constant 0 : i32
    %c0_i32_0 = arith.constant 0 : i32
    %c0_i32_1 = arith.constant 0 : i32
    %c0_i32_2 = arith.constant 0 : i32
    return %arg0, %c0_i32, %c0_i32_0, %c0_i32_1 : i32, i32, i32, i32
  }
  func.func @transform_1(%arg0: i32) -> (i32, i32, i32, i32) {
    %c0_i32 = arith.constant 0 : i32
    %c0_i32_0 = arith.constant 0 : i32
    %c0_i32_1 = arith.constant 0 : i32
    %c0_i32_2 = arith.constant 0 : i32
    return %arg0, %c0_i32, %c0_i32_0, %c0_i32_1 : i32, i32, i32, i32
  }
  func.func @transform_2(%arg0: i32) -> (i32, i32, i32, i32) {
    %c0_i32 = arith.constant 0 : i32
    %c0_i32_0 = arith.constant 0 : i32
    %c0_i32_1 = arith.constant 0 : i32
    %c0_i32_2 = arith.constant 0 : i32
    return %arg0, %c0_i32, %c0_i32_0, %c0_i32_1 : i32, i32, i32, i32
  }
  func.func @transform_3(%arg0: i32) -> (i32, i32, i32) {
    %c0_i32 = arith.constant 0 : i32
    %c0_i32_0 = arith.constant 0 : i32
    %c0_i32_1 = arith.constant 0 : i32
    return %arg0, %c0_i32, %c0_i32_0 : i32, i32, i32
  }
  func.func @transform_4(%arg0: i32) -> (i32, i32, i32) {
    %c0_i32 = arith.constant 0 : i32
    %c0_i32_0 = arith.constant 0 : i32
    %c0_i32_1 = arith.constant 0 : i32
    return %arg0, %c0_i32, %c0_i32_0 : i32, i32, i32
  }
}

module attributes {stable_mosaic.version = 11 : i64} {
  func.func @_proj_add_layernorm_kernel(%arg0: i32, %arg1: memref<8x128xf32, #tpu.memory_space<vmem>>, %arg2: memref<8x128xf32, #tpu.memory_space<vmem>>, %arg3: memref<128x128xf32, #tpu.memory_space<vmem>>, %arg4: memref<1x128xf32, #tpu.memory_space<vmem>>, %arg5: memref<1x128xf32, #tpu.memory_space<vmem>>, %arg6: memref<1x128xf32, #tpu.memory_space<vmem>>, %arg7: memref<8x128xf32, #tpu.memory_space<vmem>>) attributes {dimension_semantics = [#tpu.dimension_semantics<parallel>], iteration_bounds = array<i64: 2>, scalar_prefetch = 0 : i64, scratch_operands = 0 : i64, tpu.core_type = #tpu.core_type<tc>, window_params = [{transform_indices = @transform_0, window_bounds = array<i64: 8, 128>}, {transform_indices = @transform_1, window_bounds = array<i64: 8, 128>}, {pipeline_mode = #tpu.pipeline_mode<synchronous>, transform_indices = @transform_2, window_bounds = array<i64: 128, 128>}, {pipeline_mode = #tpu.pipeline_mode<synchronous>, transform_indices = @transform_3, window_bounds = array<i64: 1, 128>}, {pipeline_mode = #tpu.pipeline_mode<synchronous>, transform_indices = @transform_4, window_bounds = array<i64: 1, 128>}, {pipeline_mode = #tpu.pipeline_mode<synchronous>, transform_indices = @transform_5, window_bounds = array<i64: 1, 128>}, {transform_indices = @transform_6, window_bounds = array<i64: 8, 128>}]} {
    %c0 = arith.constant 0 : index
    %c0_0 = arith.constant 0 : index
    %0 = vector.load %arg1[%c0, %c0_0] : memref<8x128xf32, #tpu.memory_space<vmem>>, vector<8x128xf32>
    %1 = arith.truncf %0 : vector<8x128xf32> to vector<8x128xbf16>
    %c0_1 = arith.constant 0 : index
    %c0_2 = arith.constant 0 : index
    %2 = vector.load %arg3[%c0_1, %c0_2] : memref<128x128xf32, #tpu.memory_space<vmem>>, vector<128x128xf32>
    %3 = arith.truncf %2 : vector<128x128xf32> to vector<128x128xbf16>
    %cst = arith.constant dense<0.000000e+00> : vector<8x128xf32>
    %4 = tpu.matmul %1, %3, %cst {dimension_numbers = #tpu.dot_dimension_numbers<[1], [0], [0], [1], [0, 0, 1, 1], [], []>} : vector<8x128xbf16>, vector<128x128xbf16>, vector<8x128xf32> -> vector<8x128xf32>
    %c0_3 = arith.constant 0 : index
    %c0_4 = arith.constant 0 : index
    %5 = vector.load %arg4[%c0_3, %c0_4] : memref<1x128xf32, #tpu.memory_space<vmem>>, vector<1x128xf32>
    %6 = vector.broadcast %5 : vector<1x128xf32> to vector<8x128xf32>
    %7 = arith.addf %4, %6 : vector<8x128xf32>
    %c0_5 = arith.constant 0 : index
    %c0_6 = arith.constant 0 : index
    %8 = vector.load %arg2[%c0_5, %c0_6] : memref<8x128xf32, #tpu.memory_space<vmem>>, vector<8x128xf32>
    %9 = arith.addf %7, %8 : vector<8x128xf32>
    %c0_7 = arith.constant 0 : index
    %c0_8 = arith.constant 0 : index
    %10 = vector.load %arg5[%c0_7, %c0_8] : memref<1x128xf32, #tpu.memory_space<vmem>>, vector<1x128xf32>
    %c0_9 = arith.constant 0 : index
    %c0_10 = arith.constant 0 : index
    %11 = vector.load %arg6[%c0_9, %c0_10] : memref<1x128xf32, #tpu.memory_space<vmem>>, vector<1x128xf32>
    %cst_11 = arith.constant dense<0.000000e+00> : vector<8xf32>
    %12 = vector.multi_reduction <add>, %9, %cst_11 [1] : vector<8x128xf32> to vector<8xf32>
    %13 = vector.shape_cast %12 : vector<8xf32> to vector<8x1xf32>
    %cst_12 = arith.constant 1.280000e+02 : f32
    %14 = vector.broadcast %cst_12 : f32 to vector<8x1xf32>
    %15 = arith.divf %13, %14 : vector<8x1xf32>
    %16 = vector.broadcast %15 : vector<8x1xf32> to vector<8x128xf32>
    %17 = arith.subf %9, %16 : vector<8x128xf32>
    %18 = arith.mulf %17, %17 : vector<8x128xf32>
    %cst_13 = arith.constant dense<0.000000e+00> : vector<8xf32>
    %19 = vector.multi_reduction <add>, %18, %cst_13 [1] : vector<8x128xf32> to vector<8xf32>
    %20 = vector.shape_cast %19 : vector<8xf32> to vector<8x1xf32>
    %cst_14 = arith.constant 1.280000e+02 : f32
    %21 = vector.broadcast %cst_14 : f32 to vector<8x1xf32>
    %22 = arith.divf %20, %21 : vector<8x1xf32>
    %cst_15 = arith.constant 9.99999996E-13 : f32
    %23 = vector.broadcast %cst_15 : f32 to vector<8x1xf32>
    %24 = arith.addf %22, %23 : vector<8x1xf32>
    %25 = math.rsqrt %24 : vector<8x1xf32>
    %26 = vector.broadcast %25 : vector<8x1xf32> to vector<8x128xf32>
    %27 = arith.mulf %17, %26 : vector<8x128xf32>
    %28 = vector.broadcast %10 : vector<1x128xf32> to vector<8x128xf32>
    %29 = arith.mulf %28, %27 : vector<8x128xf32>
    %30 = vector.broadcast %11 : vector<1x128xf32> to vector<8x128xf32>
    %31 = arith.addf %29, %30 : vector<8x128xf32>
    %c0_16 = arith.constant 0 : index
    %c0_17 = arith.constant 0 : index
    %32 = vector.load %arg7[%c0_16, %c0_17] : memref<8x128xf32, #tpu.memory_space<vmem>>, vector<8x128xf32>
    tpu.vector_store %arg7[%c0_16, %c0_17], %31 {strides = array<i32>} : memref<8x128xf32, #tpu.memory_space<vmem>>, vector<8x128xf32>,
    return
  }
  func.func @transform_0(%arg0: i32) -> (i32, i32) {
    %c0_i32 = arith.constant 0 : i32
    %c0_i32_0 = arith.constant 0 : i32
    return %arg0, %c0_i32 : i32, i32
  }
  func.func @transform_1(%arg0: i32) -> (i32, i32) {
    %c0_i32 = arith.constant 0 : i32
    %c0_i32_0 = arith.constant 0 : i32
    return %arg0, %c0_i32 : i32, i32
  }
  func.func @transform_2(%arg0: i32) -> (i32, i32) {
    %c0_i32 = arith.constant 0 : i32
    %c0_i32_0 = arith.constant 0 : i32
    %c0_i32_1 = arith.constant 0 : i32
    return %c0_i32, %c0_i32_0 : i32, i32
  }
  func.func @transform_3(%arg0: i32) -> (i32, i32) {
    %c0_i32 = arith.constant 0 : i32
    %c0_i32_0 = arith.constant 0 : i32
    %c0_i32_1 = arith.constant 0 : i32
    return %c0_i32, %c0_i32_0 : i32, i32
  }
  func.func @transform_4(%arg0: i32) -> (i32, i32) {
    %c0_i32 = arith.constant 0 : i32
    %c0_i32_0 = arith.constant 0 : i32
    %c0_i32_1 = arith.constant 0 : i32
    return %c0_i32, %c0_i32_0 : i32, i32
  }
  func.func @transform_5(%arg0: i32) -> (i32, i32) {
    %c0_i32 = arith.constant 0 : i32
    %c0_i32_0 = arith.constant 0 : i32
    %c0_i32_1 = arith.constant 0 : i32
    return %c0_i32, %c0_i32_0 : i32, i32
  }
  func.func @transform_6(%arg0: i32) -> (i32, i32) {
    %c0_i32 = arith.constant 0 : i32
    %c0_i32_0 = arith.constant 0 : i32
    return %arg0, %c0_i32 : i32, i32
  }
}

module attributes {stable_mosaic.version = 11 : i64} {
  func.func @_ffn_add_layernorm_kernel(%arg0: i32, %arg1: memref<8x128xf32, #tpu.memory_space<vmem>>, %arg2: memref<128x256xf32, #tpu.memory_space<vmem>>, %arg3: memref<1x256xf32, #tpu.memory_space<vmem>>, %arg4: memref<256x128xf32, #tpu.memory_space<vmem>>, %arg5: memref<1x128xf32, #tpu.memory_space<vmem>>, %arg6: memref<1x128xf32, #tpu.memory_space<vmem>>, %arg7: memref<1x128xf32, #tpu.memory_space<vmem>>, %arg8: memref<8x128xf32, #tpu.memory_space<vmem>>) attributes {dimension_semantics = [#tpu.dimension_semantics<parallel>], iteration_bounds = array<i64: 2>, scalar_prefetch = 0 : i64, scratch_operands = 0 : i64, tpu.core_type = #tpu.core_type<tc>, window_params = [{transform_indices = @transform_0, window_bounds = array<i64: 8, 128>}, {pipeline_mode = #tpu.pipeline_mode<synchronous>, transform_indices = @transform_1, window_bounds = array<i64: 128, 256>}, {pipeline_mode = #tpu.pipeline_mode<synchronous>, transform_indices = @transform_2, window_bounds = array<i64: 1, 256>}, {pipeline_mode = #tpu.pipeline_mode<synchronous>, transform_indices = @transform_3, window_bounds = array<i64: 256, 128>}, {pipeline_mode = #tpu.pipeline_mode<synchronous>, transform_indices = @transform_4, window_bounds = array<i64: 1, 128>}, {pipeline_mode = #tpu.pipeline_mode<synchronous>, transform_indices = @transform_5, window_bounds = array<i64: 1, 128>}, {pipeline_mode = #tpu.pipeline_mode<synchronous>, transform_indices = @transform_6, window_bounds = array<i64: 1, 128>}, {transform_indices = @transform_7, window_bounds = array<i64: 8, 128>}]} {
    %c0 = arith.constant 0 : index
    %c0_0 = arith.constant 0 : index
    %0 = vector.load %arg1[%c0, %c0_0] : memref<8x128xf32, #tpu.memory_space<vmem>>, vector<8x128xf32>
    %1 = arith.truncf %0 : vector<8x128xf32> to vector<8x128xbf16>
    %c0_1 = arith.constant 0 : index
    %c0_2 = arith.constant 0 : index
    %2 = vector.load %arg2[%c0_1, %c0_2] : memref<128x256xf32, #tpu.memory_space<vmem>>, vector<128x256xf32>
    %3 = arith.truncf %2 : vector<128x256xf32> to vector<128x256xbf16>
    %c0_3 = arith.constant 0 : index
    %c0_4 = arith.constant 0 : index
    %4 = vector.load %arg4[%c0_3, %c0_4] : memref<256x128xf32, #tpu.memory_space<vmem>>, vector<256x128xf32>
    %5 = arith.truncf %4 : vector<256x128xf32> to vector<256x128xbf16>
    %cst = arith.constant dense<0.000000e+00> : vector<8x256xf32>
    %6 = tpu.matmul %1, %3, %cst {dimension_numbers = #tpu.dot_dimension_numbers<[1], [0], [0], [1], [0, 0, 1, 1], [], []>} : vector<8x128xbf16>, vector<128x256xbf16>, vector<8x256xf32> -> vector<8x256xf32>
    %c0_5 = arith.constant 0 : index
    %c0_6 = arith.constant 0 : index
    %7 = vector.load %arg3[%c0_5, %c0_6] : memref<1x256xf32, #tpu.memory_space<vmem>>, vector<1x256xf32>
    %8 = vector.broadcast %7 : vector<1x256xf32> to vector<8x256xf32>
    %9 = arith.addf %6, %8 : vector<8x256xf32>
    %cst_7 = arith.constant 0.000000e+00 : f32
    %10 = vector.broadcast %cst_7 : f32 to vector<8x256xf32>
    %11 = arith.maximumf %9, %10 : vector<8x256xf32>
    %12 = arith.truncf %11 : vector<8x256xf32> to vector<8x256xbf16>
    %cst_8 = arith.constant dense<0.000000e+00> : vector<8x128xf32>
    %13 = tpu.matmul %12, %5, %cst_8 {dimension_numbers = #tpu.dot_dimension_numbers<[1], [0], [0], [1], [0, 0, 1, 1], [], []>} : vector<8x256xbf16>, vector<256x128xbf16>, vector<8x128xf32> -> vector<8x128xf32>
    %c0_9 = arith.constant 0 : index
    %c0_10 = arith.constant 0 : index
    %14 = vector.load %arg5[%c0_9, %c0_10] : memref<1x128xf32, #tpu.memory_space<vmem>>, vector<1x128xf32>
    %15 = vector.broadcast %14 : vector<1x128xf32> to vector<8x128xf32>
    %16 = arith.addf %13, %15 : vector<8x128xf32>
    %17 = arith.addf %16, %0 : vector<8x128xf32>
    %c0_11 = arith.constant 0 : index
    %c0_12 = arith.constant 0 : index
    %18 = vector.load %arg6[%c0_11, %c0_12] : memref<1x128xf32, #tpu.memory_space<vmem>>, vector<1x128xf32>
    %c0_13 = arith.constant 0 : index
    %c0_14 = arith.constant 0 : index
    %19 = vector.load %arg7[%c0_13, %c0_14] : memref<1x128xf32, #tpu.memory_space<vmem>>, vector<1x128xf32>
    %cst_15 = arith.constant dense<0.000000e+00> : vector<8xf32>
    %20 = vector.multi_reduction <add>, %17, %cst_15 [1] : vector<8x128xf32> to vector<8xf32>
    %21 = vector.shape_cast %20 : vector<8xf32> to vector<8x1xf32>
    %cst_16 = arith.constant 1.280000e+02 : f32
    %22 = vector.broadcast %cst_16 : f32 to vector<8x1xf32>
    %23 = arith.divf %21, %22 : vector<8x1xf32>
    %24 = vector.broadcast %23 : vector<8x1xf32> to vector<8x128xf32>
    %25 = arith.subf %17, %24 : vector<8x128xf32>
    %26 = arith.mulf %25, %25 : vector<8x128xf32>
    %cst_17 = arith.constant dense<0.000000e+00> : vector<8xf32>
    %27 = vector.multi_reduction <add>, %26, %cst_17 [1] : vector<8x128xf32> to vector<8xf32>
    %28 = vector.shape_cast %27 : vector<8xf32> to vector<8x1xf32>
    %cst_18 = arith.constant 1.280000e+02 : f32
    %29 = vector.broadcast %cst_18 : f32 to vector<8x1xf32>
    %30 = arith.divf %28, %29 : vector<8x1xf32>
    %cst_19 = arith.constant 9.99999996E-13 : f32
    %31 = vector.broadcast %cst_19 : f32 to vector<8x1xf32>
    %32 = arith.addf %30, %31 : vector<8x1xf32>
    %33 = math.rsqrt %32 : vector<8x1xf32>
    %34 = vector.broadcast %33 : vector<8x1xf32> to vector<8x128xf32>
    %35 = arith.mulf %25, %34 : vector<8x128xf32>
    %36 = vector.broadcast %18 : vector<1x128xf32> to vector<8x128xf32>
    %37 = arith.mulf %36, %35 : vector<8x128xf32>
    %38 = vector.broadcast %19 : vector<1x128xf32> to vector<8x128xf32>
    %39 = arith.addf %37, %38 : vector<8x128xf32>
    %c0_20 = arith.constant 0 : index
    %c0_21 = arith.constant 0 : index
    %40 = vector.load %arg8[%c0_20, %c0_21] : memref<8x128xf32, #tpu.memory_space<vmem>>, vector<8x128xf32>
    tpu.vector_store %arg8[%c0_20, %c0_21], %39 {strides = array<i32>} : memref<8x128xf32, #tpu.memory_space<vmem>>, vector<8x128xf32>,
    return
  }
  func.func @transform_0(%arg0: i32) -> (i32, i32) {
    %c0_i32 = arith.constant 0 : i32
    %c0_i32_0 = arith.constant 0 : i32
    return %arg0, %c0_i32 : i32, i32
  }
  func.func @transform_1(%arg0: i32) -> (i32, i32) {
    %c0_i32 = arith.constant 0 : i32
    %c0_i32_0 = arith.constant 0 : i32
    %c0_i32_1 = arith.constant 0 : i32
    return %c0_i32, %c0_i32_0 : i32, i32
  }
  func.func @transform_2(%arg0: i32) -> (i32, i32) {
    %c0_i32 = arith.constant 0 : i32
    %c0_i32_0 = arith.constant 0 : i32
    %c0_i32_1 = arith.constant 0 : i32
    return %c0_i32, %c0_i32_0 : i32, i32
  }
  func.func @transform_3(%arg0: i32) -> (i32, i32) {
    %c0_i32 = arith.constant 0 : i32
    %c0_i32_0 = arith.constant 0 : i32
    %c0_i32_1 = arith.constant 0 : i32
    return %c0_i32, %c0_i32_0 : i32, i32
  }
  func.func @transform_4(%arg0: i32) -> (i32, i32) {
    %c0_i32 = arith.constant 0 : i32
    %c0_i32_0 = arith.constant 0 : i32
    %c0_i32_1 = arith.constant 0 : i32
    return %c0_i32, %c0_i32_0 : i32, i32
  }
  func.func @transform_5(%arg0: i32) -> (i32, i32) {
    %c0_i32 = arith.constant 0 : i32
    %c0_i32_0 = arith.constant 0 : i32
    %c0_i32_1 = arith.constant 0 : i32
    return %c0_i32, %c0_i32_0 : i32, i32
  }
  func.func @transform_6(%arg0: i32) -> (i32, i32) {
    %c0_i32 = arith.constant 0 : i32
    %c0_i32_0 = arith.constant 0 : i32
    %c0_i32_1 = arith.constant 0 : i32
    return %c0_i32, %c0_i32_0 : i32, i32
  }
  func.func @transform_7(%arg0: i32) -> (i32, i32) {
    %c0_i32 = arith.constant 0 : i32
    %c0_i32_0 = arith.constant 0 : i32
    return %arg0, %c0_i32 : i32, i32
  }
}

</mosaic_0001>

<llo_original>
// kernel: encoder_layer_forward.5
$region0: #{encoder_layer_forward.5}
  #allocation0 [shape = 'u32[]', space=smem, size = 0x4, offset = 0x4, fixed_abs, tag = 'smem constant byte address 0x4 - core index']
  #allocation1 [shape = 'u32[72,128]{1,0:T(1,128)}', space=vmem, size = 0x9000, scoped, tag = 'internal scratch']
  %s0 = inlined_call_operand.vmem [shape: f32[2,4,8,32], index: 0, kind: input, shape index: {}]
  %s1 = inlined_call_operand.vmem [shape: f32[2,4,8,32], index: 1, kind: input, shape index: {}]
  %s2 = inlined_call_operand.vmem [shape: f32[2,4,8,32], index: 2, kind: input, shape index: {}]
  %s3 = inlined_call_operand.vmem [shape: s32[2,8,8], index: 3, kind: input, shape index: {}]
  %s4 = inlined_call_operand.vmem [shape: f32[2,8,128], index: 4, kind: output, shape index: {}]
  %s5 = sld [smem:[#allocation0]]
  $region49: #{encoder_layer_forward.5} parent=0
    _
  %s7 = ssub.s32 1, %s5
  %s8 = scalar_select 0, %s7, %s5
  loop: start=0, step=1, limit=4
  $region2: #{encoder_layer_forward.5} parent=0 // loop_pre_header
    _
  $region3: #{encoder_layer_forward.5} parent=0 // loop_header
    %s10 = sphi 0, %s14
    %p11 = scmp.ge.s32.totalorder %s10, 4
    %s20 = sphi 0, %s22
    %s23 = sphi 0, %s20
    %s24 = sphi 0, %s23
    %s40 = sphi 0, %s24
    %s46 = sphi 0, %s48
    %s49 = sphi 0, %s46
    %s50 = sphi 0, %s49
    %s66 = sphi 0, %s50
    %s72 = sphi 0, %s74
    %s75 = sphi 0, %s72
    %s76 = sphi 0, %s75
    %s92 = sphi 0, %s76
    %s98 = sphi 0, %s100
    %s101 = sphi 0, %s98
    %s102 = sphi 0, %s101
    %s118 = sphi 0, %s102
    %s124 = sphi 0, %s126
    %s127 = sphi 0, %s124
    %s128 = sphi 0, %s127
    %s144 = sphi 0, %s128
  $region4: #{encoder_layer_forward.5} parent=0 // loop_header_branch
    %13 = sbr.rel (%p11) target = $region8
  $region5: #{encoder_layer_forward.5} parent=0 // loop_body
    %s15 = ssub.s32 %s10, 1
    %s16 = ssub.s32 %s10, 2
    %s17 = sadd.s32 %s10, 1
    %s18 = ssub.s32 %s10, %s17
    %p19 = scmp.eq.s32.totalorder %s18, 0
    %s21 = sadd.s32 %s20, 1
    %s22 = scalar_select %p19, %s20, %s21
    %p25 = pneg %p19
    %p26 = scmp.eq.s32.totalorder %s10, 1
    %p27 = por %p25, %p26
    %p28 = scmp.ne.s32.totalorder %s20, %s23
    %p29 = scmp.eq.s32.totalorder %s10, 0
    %p30 = por %p28, %p29
    %p31 = scmp.ne.s32.totalorder %s20, %s23
    %p32 = scmp.eq.s32.totalorder %s15, 1
    %p33 = por %p31, %p32
    %p34 = scmp.ne.s32.totalorder %s23, %s24
    %p35 = scmp.eq.s32.totalorder %s15, 0
    %p36 = por %p34, %p35
    %p37 = scmp.ne.s32.totalorder %s23, %s24
    %p38 = scmp.eq.s32.totalorder %s16, 1
    %p39 = por %p37, %p38
    %p41 = scmp.ne.s32.totalorder %s24, %s40
    %p42 = scmp.eq.s32.totalorder %s16, 0
    %p43 = por %p41, %p42
    %s44 = ssub.s32 %s10, %s17
    %p45 = scmp.eq.s32.totalorder %s44, 0
    %s47 = sadd.s32 %s46, 1
    %s48 = scalar_select %p45, %s46, %s47
    %p51 = pneg %p45
    %p52 = scmp.eq.s32.totalorder %s10, 1
    %p53 = por %p51, %p52
    %p54 = scmp.ne.s32.totalorder %s46, %s49
    %p55 = scmp.eq.s32.totalorder %s10, 0
    %p56 = por %p54, %p55
    %p57 = scmp.ne.s32.totalorder %s46, %s49
    %p58 = scmp.eq.s32.totalorder %s15, 1
    %p59 = por %p57, %p58
    %p60 = scmp.ne.s32.totalorder %s49, %s50
    %p61 = scmp.eq.s32.totalorder %s15, 0
    %p62 = por %p60, %p61
    %p63 = scmp.ne.s32.totalorder %s49, %s50
    %p64 = scmp.eq.s32.totalorder %s16, 1
    %p65 = por %p63, %p64
    %p67 = scmp.ne.s32.totalorder %s50, %s66
    %p68 = scmp.eq.s32.totalorder %s16, 0
    %p69 = por %p67, %p68
    %s70 = ssub.s32 %s10, %s17
    %p71 = scmp.eq.s32.totalorder %s70, 0
    %s73 = sadd.s32 %s72, 1
    %s74 = scalar_select %p71, %s72, %s73
    %p77 = pneg %p71
    %p78 = scmp.eq.s32.totalorder %s10, 1
    %p79 = por %p77, %p78
    %p80 = scmp.ne.s32.totalorder %s72, %s75
    %p81 = scmp.eq.s32.totalorder %s10, 0
    %p82 = por %p80, %p81
    %p83 = scmp.ne.s32.totalorder %s72, %s75
    %p84 = scmp.eq.s32.totalorder %s15, 1
    %p85 = por %p83, %p84
    %p86 = scmp.ne.s32.totalorder %s75, %s76
    %p87 = scmp.eq.s32.totalorder %s15, 0
    %p88 = por %p86, %p87
    %p89 = scmp.ne.s32.totalorder %s75, %s76
    %p90 = scmp.eq.s32.totalorder %s16, 1
    %p91 = por %p89, %p90
    %p93 = scmp.ne.s32.totalorder %s76, %s92
    %p94 = scmp.eq.s32.totalorder %s16, 0
    %p95 = por %p93, %p94
    %s96 = ssub.s32 %s10, %s17
    %p97 = scmp.eq.s32.totalorder %s96, 0
    %s99 = sadd.s32 %s98, 1
    %s100 = scalar_select %p97, %s98, %s99
    %p103 = pneg %p97
    %p104 = scmp.eq.s32.totalorder %s10, 1
    %p105 = por %p103, %p104
    %p106 = scmp.ne.s32.totalorder %s98, %s101
    %p107 = scmp.eq.s32.totalorder %s10, 0
    %p108 = por %p106, %p107
    %p109 = scmp.ne.s32.totalorder %s98, %s101
    %p110 = scmp.eq.s32.totalorder %s15, 1
    %p111 = por %p109, %p110
    %p112 = scmp.ne.s32.totalorder %s101, %s102
    %p113 = scmp.eq.s32.totalorder %s15, 0
    %p114 = por %p112, %p113
    %p115 = scmp.ne.s32.totalorder %s101, %s102
    %p116 = scmp.eq.s32.totalorder %s16, 1
    %p117 = por %p115, %p116
    %p119 = scmp.ne.s32.totalorder %s102, %s118
    %p120 = scmp.eq.s32.totalorder %s16, 0
    %p121 = por %p119, %p120
    %s122 = ssub.s32 %s10, %s17
    %p123 = scmp.eq.s32.totalorder %s122, 0
    %s125 = sadd.s32 %s124, 1
    %s126 = scalar_select %p123, %s124, %s125
    %p129 = pneg %p123
    %p130 = scmp.eq.s32.totalorder %s10, 1
    %p131 = por %p129, %p130
    %p132 = scmp.ne.s32.totalorder %s124, %s127
    %p133 = scmp.eq.s32.totalorder %s10, 0
    %p134 = por %p132, %p133
    %p135 = scmp.ne.s32.totalorder %s124, %s127
    %p136 = scmp.eq.s32.totalorder %s15, 1
    %p137 = por %p135, %p136
    %p138 = scmp.ne.s32.totalorder %s127, %s128
    %p139 = scmp.eq.s32.totalorder %s15, 0
    %p140 = por %p138, %p139
    %p141 = scmp.ne.s32.totalorder %s127, %s128
    %p142 = scmp.eq.s32.totalorder %s16, 1
    %p143 = por %p141, %p142
    %p145 = scmp.ne.s32.totalorder %s128, %s144
    %p146 = scmp.eq.s32.totalorder %s16, 0
    %p147 = por %p145, %p146
    %p148 = scmp.le.s32.totalorder 1, %s10
    %p149 = scmp.lt.s32.totalorder %s10, 3
    %p150 = pnand %p148, %p149
    %p151 = pneg %p150
    // Predicated region
    $region9: #{encoder_layer_forward.5} parent=5 // pred_check
      _
    $region10: #{encoder_layer_forward.5} parent=5 // pred_check_branch
      %153 = sbr.rel (%p150) target = $region12
    $region11: #{encoder_layer_forward.5} parent=5 // pred_region
      %s154 = ssub.s32 %s10, 1
    $region12: #{encoder_layer_forward.5} parent=5 // pred_fallthru
      _
    %p155 = scmp.lt.s32.totalorder %s10, 2
    // Predicated region
    $region13: #{encoder_layer_forward.5} parent=5 // pred_check
      %p156 = pneg %p155
    $region14: #{encoder_layer_forward.5} parent=5 // pred_check_branch
      %158 = sbr.rel (%p156) target = $region16
    $region15: #{encoder_layer_forward.5} parent=5 // pred_region
      // Predicated region
      $region17: #{encoder_layer_forward.5} parent=15 // pred_check
        %p159 = pneg %p30
      $region18: #{encoder_layer_forward.5} parent=15 // pred_check_branch
        %161 = sbr.rel (%p159) target = $region20
      $region19: #{encoder_layer_forward.5} parent=15 // pred_region
        %p162 = scmp.lt.s32.totalorder %s10, 1
        %s163 = scalar_select %p162, %s10, 1
        %s164 = smul.addr %s163, 4
        %s165 = smul.addr %s164, 8
        %s166 = scalar_lea.vmem %s0, %s165
      $region20: #{encoder_layer_forward.5} parent=15 // pred_fallthru
        _
      // Predicated region
      $region21: #{encoder_layer_forward.5} parent=15 // pred_check
        %p167 = pneg %p56
      $region22: #{encoder_layer_forward.5} parent=15 // pred_check_branch
        %169 = sbr.rel (%p167) target = $region24
      $region23: #{encoder_layer_forward.5} parent=15 // pred_region
        %p170 = scmp.lt.s32.totalorder %s10, 1
        %s171 = scalar_select %p170, %s10, 1
        %s172 = smul.addr %s171, 4
        %s173 = smul.addr %s172, 8
        %s174 = scalar_lea.vmem %s1, %s173
      $region24: #{encoder_layer_forward.5} parent=15 // pred_fallthru
        _
      // Predicated region
      $region25: #{encoder_layer_forward.5} parent=15 // pred_check
        %p175 = pneg %p82
      $region26: #{encoder_layer_forward.5} parent=15 // pred_check_branch
        %177 = sbr.rel (%p175) target = $region28
      $region27: #{encoder_layer_forward.5} parent=15 // pred_region
        %p178 = scmp.lt.s32.totalorder %s10, 1
        %s179 = scalar_select %p178, %s10, 1
        %s180 = smul.addr %s179, 4
        %s181 = smul.addr %s180, 8
        %s182 = scalar_lea.vmem %s2, %s181
      $region28: #{encoder_layer_forward.5} parent=15 // pred_fallthru
        _
      // Predicated region
      $region29: #{encoder_layer_forward.5} parent=15 // pred_check
        %p183 = pneg %p108
      $region30: #{encoder_layer_forward.5} parent=15 // pred_check_branch
        %185 = sbr.rel (%p183) target = $region32
      $region31: #{encoder_layer_forward.5} parent=15 // pred_region
        %p186 = scmp.lt.s32.totalorder %s10, 1
        %s187 = scalar_select %p186, %s10, 1
        %s188 = smul.addr %s187, 8
        %s189 = scalar_lea.vmem %s3, %s188
      $region32: #{encoder_layer_forward.5} parent=15 // pred_fallthru
        _
    $region16: #{encoder_layer_forward.5} parent=5 // pred_fallthru
      _
    %p190 = scmp.le.s32.totalorder 1, %s10
    %p191 = scmp.lt.s32.totalorder %s10, 3
    %p192 = pnand %p190, %p191
    %p193 = pneg %p192
    // Predicated region
    $region33: #{encoder_layer_forward.5} parent=5 // pred_check
      _
    $region34: #{encoder_layer_forward.5} parent=5 // pred_check_branch
      %195 = sbr.rel (%p192) target = $region36
    $region35: #{encoder_layer_forward.5} parent=5 // pred_region
      %s196 = ssub.s32 %s10, 1
      %p197 = scmp.lt.s32.totalorder %s15, 1
      %s198 = scalar_select %p197, %s15, 1
      %s199 = smul.addr %s198, 4
      %s200 = smul.addr %s199, 8
      %s201 = scalar_lea.vmem %s0, %s200
      %p202 = pneg %p36
      %p203 = pneg %p33
      %p204 = scmp.lt.s32.totalorder %s15, 1
      %s205 = scalar_select %p204, %s15, 1
      %s206 = smul.addr %s205, 4
      %s207 = smul.addr %s206, 8
      %s208 = scalar_lea.vmem %s1, %s207
      %p209 = pneg %p62
      %p210 = pneg %p59
      %p211 = scmp.lt.s32.totalorder %s15, 1
      %s212 = scalar_select %p211, %s15, 1
      %s213 = smul.addr %s212, 4
      %s214 = smul.addr %s213, 8
      %s215 = scalar_lea.vmem %s2, %s214
      %p216 = pneg %p88
      %p217 = pneg %p85
      %p218 = scmp.lt.s32.totalorder %s15, 1
      %s219 = scalar_select %p218, %s15, 1
      %s220 = smul.addr %s219, 8
      %s221 = scalar_lea.vmem %s3, %s220
      %p222 = pneg %p114
      %p223 = pneg %p111
      %p224 = pneg %p140
      %p225 = pneg %p137
      %p226 = scmp.lt.s32.totalorder %s15, 1
      %s227 = scalar_select %p226, %s15, 1
      %s228 = smul.addr %s227, 8
      %s229 = scalar_lea.vmem %s4, %s228
      %p230 = scmp.lt.s32.totalorder %s15, 1
      %s231 = scalar_select %p230, %s15, 1
      %s232 = smul.addr %s231, 4
      %s233 = smul.addr %s232, 8
      %s234 = scalar_lea.vmem %s0, %s233
      %p235 = scmp.lt.s32.totalorder %s15, 1
      %s236 = scalar_select %p235, %s15, 1
      %s237 = smul.addr %s236, 4
      %s238 = smul.addr %s237, 8
      %s239 = scalar_lea.vmem %s1, %s238
      %p240 = scmp.lt.s32.totalorder %s15, 1
      %s241 = scalar_select %p240, %s15, 1
      %s242 = smul.addr %s241, 4
      %s243 = smul.addr %s242, 8
      %s244 = scalar_lea.vmem %s2, %s243
      %p245 = scmp.lt.s32.totalorder %s15, 1
      %s246 = scalar_select %p245, %s15, 1
      %s247 = smul.addr %s246, 8
      %s248 = scalar_lea.vmem %s3, %s247
      %p249 = scmp.lt.s32.totalorder %s15, 1
      %s250 = scalar_select %p249, %s15, 1
      %s251 = smul.addr %s250, 8
      %s252 = scalar_lea.vmem %s4, %s251
      %v254 = vld [vmem:[%s234] sm:$0xff]
      %v255 = vld [vmem:[%s234 + $0x8] sm:$0xff]
      %v256 = vld [vmem:[%s234 + $0x10] sm:$0xff]
      %v257 = vld [vmem:[%s234 + $0x18] sm:$0xff]
      %v258 = vmul.f32 %v254, 0.17677669
      %v259 = vmul.f32 %v255, 0.17677669
      %v260 = vmul.f32 %v256, 0.17677669
      %v261 = vmul.f32 %v257, 0.17677669
      %v262 = vpack.c.bf16 %v258, %v258
      %v263 = vpack.c.bf16 %v259, %v259
      %v264 = vpack.c.bf16 %v260, %v260
      %v265 = vpack.c.bf16 %v261, %v261
      %v266 = vld [vmem:[%s239] sm:$0xff]
      %v267 = vld [vmem:[%s239 + $0x8] sm:$0xff]
      %v268 = vld [vmem:[%s239 + $0x10] sm:$0xff]
      %v269 = vld [vmem:[%s239 + $0x18] sm:$0xff]
      %v270 = vpack.c.bf16 %v266, %v266
      %v271 = vpack.c.bf16 %v267, %v267
      %v272 = vpack.c.bf16 %v268, %v268
      %v273 = vpack.c.bf16 %v269, %v269
      %v274 = vld [vmem:[%s244] sm:$0xff]
      %v275 = vld [vmem:[%s244 + $0x8] sm:$0xff]
      %v276 = vld [vmem:[%s244 + $0x10] sm:$0xff]
      %v277 = vld [vmem:[%s244 + $0x18] sm:$0xff]
      %v278 = vpack.c.bf16 %v274, %v274
      %v279 = vpack.c.bf16 %v275, %v275
      %v280 = vpack.c.bf16 %v276, %v276
      %v281 = vpack.c.bf16 %v277, %v277
      %v282 = vld [vmem:[%s248] sm:$0xff]
      %vm283 = vcmask 261120
      %v285 = vsel %vm283, %v262, 0
      %v288 = vsel %vm283, %v270, 0
      %290 = vmatpush.bf16.xpose.msra.mxu0 0
      %291 = vmatpush.bf16.xpose.msra.mxu0 0
      %292 = vmatpush.bf16.xpose.msra.mxu0 0
      %293 = vmatpush.bf16.xpose.msra.mxu0 0
      %294 = vmatpush.bf16.xpose.msra.mxu0 0
      %295 = vmatpush.bf16.xpose.msra.mxu0 0
      %296 = vmatpush.bf16.xpose.msra.mxu0 0
      %297 = vmatpush.bf16.xpose.msra.mxu0 %v288
      %298 = vmatmul.bf16.gmra.mxu0 %v285
      %v299 = vpop.f32.mrf.mxu0
      %v300 = vadd.f32 0.0, %v299
      %v301 = vpop.f32.mrf.mxu0
      %302 = vdwg.mxu0
      %v304 = vsel %vm283, %v263, 0
      %v307 = vsel %vm283, %v271, 0
      %309 = vmatpush.bf16.xpose.msra.mxu0 0
      %310 = vmatpush.bf16.xpose.msra.mxu0 0
      %311 = vmatpush.bf16.xpose.msra.mxu0 0
      %312 = vmatpush.bf16.xpose.msra.mxu0 0
      %313 = vmatpush.bf16.xpose.msra.mxu0 0
      %314 = vmatpush.bf16.xpose.msra.mxu0 0
      %315 = vmatpush.bf16.xpose.msra.mxu0 0
      %316 = vmatpush.bf16.xpose.msra.mxu0 %v307
      %317 = vmatmul.bf16.gmra.mxu0 %v304
      %v318 = vpop.f32.mrf.mxu0
      %v319 = vadd.f32 0.0, %v318
      %v320 = vpop.f32.mrf.mxu0
      %321 = vdwg.mxu0
      %v323 = vsel %vm283, %v264, 0
      %v326 = vsel %vm283, %v272, 0
      %328 = vmatpush.bf16.xpose.msra.mxu0 0
      %329 = vmatpush.bf16.xpose.msra.mxu0 0
      %330 = vmatpush.bf16.xpose.msra.mxu0 0
      %331 = vmatpush.bf16.xpose.msra.mxu0 0
      %332 = vmatpush.bf16.xpose.msra.mxu0 0
      %333 = vmatpush.bf16.xpose.msra.mxu0 0
      %334 = vmatpush.bf16.xpose.msra.mxu0 0
      %335 = vmatpush.bf16.xpose.msra.mxu0 %v326
      %336 = vmatmul.bf16.gmra.mxu0 %v323
      %v337 = vpop.f32.mrf.mxu0
      %v338 = vadd.f32 0.0, %v337
      %v339 = vpop.f32.mrf.mxu0
      %340 = vdwg.mxu0
      %v342 = vsel %vm283, %v265, 0
      %v345 = vsel %vm283, %v273, 0
      %347 = vmatpush.bf16.xpose.msra.mxu0 0
      %348 = vmatpush.bf16.xpose.msra.mxu0 0
      %349 = vmatpush.bf16.xpose.msra.mxu0 0
      %350 = vmatpush.bf16.xpose.msra.mxu0 0
      %351 = vmatpush.bf16.xpose.msra.mxu0 0
      %352 = vmatpush.bf16.xpose.msra.mxu0 0
      %353 = vmatpush.bf16.xpose.msra.mxu0 0
      %354 = vmatpush.bf16.xpose.msra.mxu0 %v345
      %355 = vmatmul.bf16.gmra.mxu0 %v342
      %v356 = vpop.f32.mrf.mxu0
      %v357 = vadd.f32 0.0, %v356
      %v358 = vpop.f32.mrf.mxu0
      %359 = vdwg.mxu0
      %vm360 = vcmp.eq.s32.totalorder %v282, 0
      %v361 = vsel %vm360, 1, 0
      %vm362 = vcmp.eq.s32.totalorder %v361, 1
      %v363 = vsel %vm362, -10000.0, %v300
      %v364 = vsel %vm362, -10000.0, %v319
      %v365 = vsel %vm362, -10000.0, %v338
      %v366 = vsel %vm362, -10000.0, %v357
      %vm367 = vcmask 64512
      %v368 = vsel %vm367, %v363, -inf
      %369 = vmax.xlane.f32.xlu0 %v368
      %v370 = vpop.xlane.xlu0 %369
      %v371 = vsel %vm367, %v364, -inf
      %372 = vmax.xlane.f32.xlu0 %v371
      %v373 = vpop.xlane.xlu0 %372
      %v374 = vsel %vm367, %v365, -inf
      %375 = vmax.xlane.f32.xlu0 %v374
      %v376 = vpop.xlane.xlu0 %375
      %v377 = vsel %vm367, %v366, -inf
      %378 = vmax.xlane.f32.xlu0 %v377
      %v379 = vpop.xlane.xlu0 %378
      %v380 = vsub.f32 %v363, %v370
      %v381 = vsub.f32 %v364, %v373
      %v382 = vsub.f32 %v365, %v376
      %v383 = vsub.f32 %v366, %v379
      %v384 = vmul.f32 %v380, 1.442695
      %v385 = vpow.pop %v384
      %v386 = vmul.f32 %v381, 1.442695
      %v387 = vpow.pop %v386
      %v388 = vmul.f32 %v382, 1.442695
      %v389 = vpow.pop %v388
      %v390 = vmul.f32 %v383, 1.442695
      %v391 = vpow.pop %v390
      %v392 = vsel %vm367, %v385, 0.0
      %393 = vadd.xlane.f32.xlu0 %v392
      %v394 = vpop.xlane.xlu0 %393
      %v395 = vsel %vm367, %v387, 0.0
      %396 = vadd.xlane.f32.xlu0 %v395
      %v397 = vpop.xlane.xlu0 %396
      %v398 = vsel %vm367, %v389, 0.0
      %399 = vadd.xlane.f32.xlu0 %v398
      %v400 = vpop.xlane.xlu0 %399
      %v401 = vsel %vm367, %v391, 0.0
      %402 = vadd.xlane.f32.xlu0 %v401
      %v403 = vpop.xlane.xlu0 %402
      %v404 = vpack.c.bf16 %v385, %v385
      %v405 = vpack.c.bf16 %v387, %v387
      %v406 = vpack.c.bf16 %v389, %v389
      %v407 = vpack.c.bf16 %v391, %v391
      %v409 = vsel %vm367, %v404, 0
      %vm411 = vcmask 1043456
      %v413 = vsel %vm411, %v278, 0
      %415 = vmatpush.bf16.msra.mxu0 0
      %416 = vmatpush.bf16.msra.mxu0 0
      %417 = vmatpush.bf16.msra.mxu0 0
      %418 = vmatpush.bf16.msra.mxu0 0
      %419 = vmatpush.bf16.msra.mxu0 0
      %420 = vmatpush.bf16.msra.mxu0 0
      %421 = vmatpush.bf16.msra.mxu0 0
      %422 = vmatpush.bf16.msra.mxu0 %v413
      %423 = vmatmul.bf16.gmra.mxu0 %v409
      %v424 = vpop.f32.mrf.mxu0
      %v425 = vadd.f32 0.0, %v424
      %v426 = vpop.f32.mrf.mxu0
      %427 = vdwg.mxu0
      %v429 = vsel %vm367, %v405, 0
      %v432 = vsel %vm411, %v279, 0
      %434 = vmatpush.bf16.msra.mxu0 0
      %435 = vmatpush.bf16.msra.mxu0 0
      %436 = vmatpush.bf16.msra.mxu0 0
      %437 = vmatpush.bf16.msra.mxu0 0
      %438 = vmatpush.bf16.msra.mxu0 0
      %439 = vmatpush.bf16.msra.mxu0 0
      %440 = vmatpush.bf16.msra.mxu0 0
      %441 = vmatpush.bf16.msra.mxu0 %v432
      %442 = vmatmul.bf16.gmra.mxu0 %v429
      %v443 = vpop.f32.mrf.mxu0
      %v444 = vadd.f32 0.0, %v443
      %v445 = vpop.f32.mrf.mxu0
      %446 = vdwg.mxu0
      %v448 = vsel %vm367, %v406, 0
      %v451 = vsel %vm411, %v280, 0
      %453 = vmatpush.bf16.msra.mxu0 0
      %454 = vmatpush.bf16.msra.mxu0 0
      %455 = vmatpush.bf16.msra.mxu0 0
      %456 = vmatpush.bf16.msra.mxu0 0
      %457 = vmatpush.bf16.msra.mxu0 0
      %458 = vmatpush.bf16.msra.mxu0 0
      %459 = vmatpush.bf16.msra.mxu0 0
      %460 = vmatpush.bf16.msra.mxu0 %v451
      %461 = vmatmul.bf16.gmra.mxu0 %v448
      %v462 = vpop.f32.mrf.mxu0
      %v463 = vadd.f32 0.0, %v462
      %v464 = vpop.f32.mrf.mxu0
      %465 = vdwg.mxu0
      %v467 = vsel %vm367, %v407, 0
      %v470 = vsel %vm411, %v281, 0
      %472 = vmatpush.bf16.msra.mxu0 0
      %473 = vmatpush.bf16.msra.mxu0 0
      %474 = vmatpush.bf16.msra.mxu0 0
      %475 = vmatpush.bf16.msra.mxu0 0
      %476 = vmatpush.bf16.msra.mxu0 0
      %477 = vmatpush.bf16.msra.mxu0 0
      %478 = vmatpush.bf16.msra.mxu0 0
      %479 = vmatpush.bf16.msra.mxu0 %v470
      %480 = vmatmul.bf16.gmra.mxu0 %v467
      %v481 = vpop.f32.mrf.mxu0
      %v482 = vadd.f32 0.0, %v481
      %v483 = vpop.f32.mrf.mxu0
      %484 = vdwg.mxu0
      %v485 = vrcp.pop %v394
      %v486 = vrcp.pop %v397
      %v487 = vrcp.pop %v400
      %v488 = vrcp.pop %v403
      %v489 = vmul.f32 %v425, %v485
      %v490 = vmul.f32 %v444, %v486
      %v491 = vmul.f32 %v463, %v487
      %v492 = vmul.f32 %v482, %v488
      %494 = vrot.lane.b32.xlu0 %v490, 32
      %v495 = vpop.permute.xlu0 %494
      %498 = vrot.lane.b32.xlu0 %v491, 64
      %v499 = vpop.permute.xlu0 %498
      %502 = vrot.lane.b32.xlu0 %v492, 96
      %v503 = vpop.permute.xlu0 %502
      %v505 = vsel %vm283, %v489, %v495
      %vm506 = vcmask 523264
      %v507 = vsel %vm506, %v505, %v499
      %vm508 = vcmask 785408
      %v509 = vsel %vm508, %v507, %v503
      %510 = vst [vmem:[%s252] sm:$0xff] %v509
      %p511 = scmp.lt.s32.totalorder %s15, 1
      %s512 = scalar_select %p511, %s15, 1
      %s513 = smul.addr %s512, 8
      %s514 = scalar_lea.vmem %s4, %s513
      // Predicated region
      $region37: #{encoder_layer_forward.5} parent=35 // pred_check
        %p515 = pneg %p137
      $region38: #{encoder_layer_forward.5} parent=35 // pred_check_branch
        %517 = sbr.rel (%p515) target = $region40
      $region39: #{encoder_layer_forward.5} parent=35 // pred_region
        _
      $region40: #{encoder_layer_forward.5} parent=35 // pred_fallthru
        _
    $region36: #{encoder_layer_forward.5} parent=5 // pred_fallthru
      _
    %p518 = scmp.le.s32.totalorder 2, %s10
    // Predicated region
    $region41: #{encoder_layer_forward.5} parent=5 // pred_check
      %p519 = pneg %p518
    $region42: #{encoder_layer_forward.5} parent=5 // pred_check_branch
      %521 = sbr.rel (%p519) target = $region44
    $region43: #{encoder_layer_forward.5} parent=5 // pred_region
      %s522 = ssub.s32 %s10, 2
      // Predicated region
      $region45: #{encoder_layer_forward.5} parent=43 // pred_check
        %p523 = pneg %p143
      $region46: #{encoder_layer_forward.5} parent=43 // pred_check_branch
        %525 = sbr.rel (%p523) target = $region48
      $region47: #{encoder_layer_forward.5} parent=43 // pred_region
        %p526 = scmp.lt.s32.totalorder %s16, 1
        %s527 = scalar_select %p526, %s16, 1
        %s528 = smul.addr %s527, 8
        %s529 = scalar_lea.vmem %s4, %s528
      $region48: #{encoder_layer_forward.5} parent=43 // pred_fallthru
        _
    $region44: #{encoder_layer_forward.5} parent=5 // pred_fallthru
      _
  $region6: #{encoder_layer_forward.5} parent=0 // loop_footer
    %s14 = sadd.s32 1, %s10
  $region7: #{encoder_layer_forward.5} parent=0 // loop_footer_branch
    %9 = sbr.rel target = $region3
  $region8: #{encoder_layer_forward.5} parent=0 // loop_exit
    _

// kernel: encoder_layer_forward.4
$region0: #{encoder_layer_forward.4}
  #allocation0 [shape = 'u32[]', space=smem, size = 0x4, offset = 0x4, fixed_abs, tag = 'smem constant byte address 0x4 - core index']
  #allocation1 [shape = 'u32[72,128]{1,0:T(1,128)}', space=vmem, size = 0x9000, scoped, tag = 'internal scratch']
  %s0 = inlined_call_operand.vmem [shape: f32[16,128], index: 0, kind: input, shape index: {}]
  %s1 = inlined_call_operand.vmem [shape: f32[128,384], index: 1, kind: input, shape index: {}]
  %s2 = inlined_call_operand.vmem [shape: f32[1,384], index: 2, kind: input, shape index: {}]
  %s3 = inlined_call_operand.vmem [shape: f32[16,384], index: 3, kind: output, shape index: {}]
  %s4 = sld [smem:[#allocation0]]
  $region45: #{encoder_layer_forward.4} parent=0
    _
  %s6 = ssub.s32 1, %s4
  %s7 = scalar_select 0, %s6, %s4
  loop: start=0, step=1, limit=4
  $region2: #{encoder_layer_forward.4} parent=0 // loop_pre_header
    _
  $region3: #{encoder_layer_forward.4} parent=0 // loop_header
    %s9 = sphi 0, %s13
    %p10 = scmp.ge.s32.totalorder %s9, 4
    %s19 = sphi 0, %s21
    %s22 = sphi 0, %s19
    %s23 = sphi 0, %s22
    %s39 = sphi 0, %s23
    %s43 = sphi 0, %s43
    %s45 = sphi 0, %s43
    %s46 = sphi 0, %s45
    %s60 = sphi 0, %s46
    %s64 = sphi 0, %s64
    %s66 = sphi 0, %s64
    %s67 = sphi 0, %s66
    %s81 = sphi 0, %s67
    %s87 = sphi 0, %s89
    %s90 = sphi 0, %s87
    %s91 = sphi 0, %s90
    %s107 = sphi 0, %s91
  $region4: #{encoder_layer_forward.4} parent=0 // loop_header_branch
    %12 = sbr.rel (%p10) target = $region8
  $region5: #{encoder_layer_forward.4} parent=0 // loop_body
    %s14 = ssub.s32 %s9, 1
    %s15 = ssub.s32 %s9, 2
    %s16 = sadd.s32 %s9, 1
    %s17 = ssub.s32 %s9, %s16
    %p18 = scmp.eq.s32.totalorder %s17, 0
    %s20 = sadd.s32 %s19, 1
    %s21 = scalar_select %p18, %s19, %s20
    %p24 = pneg %p18
    %p25 = scmp.eq.s32.totalorder %s9, 1
    %p26 = por %p24, %p25
    %p27 = scmp.ne.s32.totalorder %s19, %s22
    %p28 = scmp.eq.s32.totalorder %s9, 0
    %p29 = por %p27, %p28
    %p30 = scmp.ne.s32.totalorder %s19, %s22
    %p31 = scmp.eq.s32.totalorder %s14, 1
    %p32 = por %p30, %p31
    %p33 = scmp.ne.s32.totalorder %s22, %s23
    %p34 = scmp.eq.s32.totalorder %s14, 0
    %p35 = por %p33, %p34
    %p36 = scmp.ne.s32.totalorder %s22, %s23
    %p37 = scmp.eq.s32.totalorder %s15, 1
    %p38 = por %p36, %p37
    %p40 = scmp.ne.s32.totalorder %s23, %s39
    %p41 = scmp.eq.s32.totalorder %s15, 0
    %p42 = por %p40, %p41
    %s44 = sadd.s32 %s43, 1
    %p47 = scmp.eq.s32.totalorder %s9, 1
    %p48 = scmp.ne.s32.totalorder %s43, %s45
    %p49 = scmp.eq.s32.totalorder %s9, 0
    %p50 = por %p48, %p49
    %p51 = scmp.ne.s32.totalorder %s43, %s45
    %p52 = scmp.eq.s32.totalorder %s14, 1
    %p53 = por %p51, %p52
    %p54 = scmp.ne.s32.totalorder %s45, %s46
    %p55 = scmp.eq.s32.totalorder %s14, 0
    %p56 = por %p54, %p55
    %p57 = scmp.ne.s32.totalorder %s45, %s46
    %p58 = scmp.eq.s32.totalorder %s15, 1
    %p59 = por %p57, %p58
    %p61 = scmp.ne.s32.totalorder %s46, %s60
    %p62 = scmp.eq.s32.totalorder %s15, 0
    %p63 = por %p61, %p62
    %s65 = sadd.s32 %s64, 1
    %p68 = scmp.eq.s32.totalorder %s9, 1
    %p69 = scmp.ne.s32.totalorder %s64, %s66
    %p70 = scmp.eq.s32.totalorder %s9, 0
    %p71 = por %p69, %p70
    %p72 = scmp.ne.s32.totalorder %s64, %s66
    %p73 = scmp.eq.s32.totalorder %s14, 1
    %p74 = por %p72, %p73
    %p75 = scmp.ne.s32.totalorder %s66, %s67
    %p76 = scmp.eq.s32.totalorder %s14, 0
    %p77 = por %p75, %p76
    %p78 = scmp.ne.s32.totalorder %s66, %s67
    %p79 = scmp.eq.s32.totalorder %s15, 1
    %p80 = por %p78, %p79
    %p82 = scmp.ne.s32.totalorder %s67, %s81
    %p83 = scmp.eq.s32.totalorder %s15, 0
    %p84 = por %p82, %p83
    %s85 = ssub.s32 %s9, %s16
    %p86 = scmp.eq.s32.totalorder %s85, 0
    %s88 = sadd.s32 %s87, 1
    %s89 = scalar_select %p86, %s87, %s88
    %p92 = pneg %p86
    %p93 = scmp.eq.s32.totalorder %s9, 1
    %p94 = por %p92, %p93
    %p95 = scmp.ne.s32.totalorder %s87, %s90
    %p96 = scmp.eq.s32.totalorder %s9, 0
    %p97 = por %p95, %p96
    %p98 = scmp.ne.s32.totalorder %s87, %s90
    %p99 = scmp.eq.s32.totalorder %s14, 1
    %p100 = por %p98, %p99
    %p101 = scmp.ne.s32.totalorder %s90, %s91
    %p102 = scmp.eq.s32.totalorder %s14, 0
    %p103 = por %p101, %p102
    %p104 = scmp.ne.s32.totalorder %s90, %s91
    %p105 = scmp.eq.s32.totalorder %s15, 1
    %p106 = por %p104, %p105
    %p108 = scmp.ne.s32.totalorder %s91, %s107
    %p109 = scmp.eq.s32.totalorder %s15, 0
    %p110 = por %p108, %p109
    %p111 = scmp.le.s32.totalorder 1, %s9
    %p112 = scmp.lt.s32.totalorder %s9, 3
    %p113 = pnand %p111, %p112
    %p114 = pneg %p113
    // Predicated region
    $region9: #{encoder_layer_forward.4} parent=5 // pred_check
      _
    $region10: #{encoder_layer_forward.4} parent=5 // pred_check_branch
      %116 = sbr.rel (%p113) target = $region12
    $region11: #{encoder_layer_forward.4} parent=5 // pred_region
      %s117 = ssub.s32 %s9, 1
      // Predicated region
      $region13: #{encoder_layer_forward.4} parent=11 // pred_check
        %p118 = pneg %p56
      $region14: #{encoder_layer_forward.4} parent=11 // pred_check_branch
        %120 = sbr.rel (%p118) target = $region16
      $region15: #{encoder_layer_forward.4} parent=11 // pred_region
        _
      $region16: #{encoder_layer_forward.4} parent=11 // pred_fallthru
        _
      // Predicated region
      $region17: #{encoder_layer_forward.4} parent=11 // pred_check
        %p121 = pneg %p77
      $region18: #{encoder_layer_forward.4} parent=11 // pred_check_branch
        %123 = sbr.rel (%p121) target = $region20
      $region19: #{encoder_layer_forward.4} parent=11 // pred_region
        _
      $region20: #{encoder_layer_forward.4} parent=11 // pred_fallthru
        _
    $region12: #{encoder_layer_forward.4} parent=5 // pred_fallthru
      _
    %p124 = scmp.lt.s32.totalorder %s9, 2
    // Predicated region
    $region21: #{encoder_layer_forward.4} parent=5 // pred_check
      %p125 = pneg %p124
    $region22: #{encoder_layer_forward.4} parent=5 // pred_check_branch
      %127 = sbr.rel (%p125) target = $region24
    $region23: #{encoder_layer_forward.4} parent=5 // pred_region
      // Predicated region
      $region25: #{encoder_layer_forward.4} parent=23 // pred_check
        %p128 = pneg %p29
      $region26: #{encoder_layer_forward.4} parent=23 // pred_check_branch
        %130 = sbr.rel (%p128) target = $region28
      $region27: #{encoder_layer_forward.4} parent=23 // pred_region
        %p131 = scmp.lt.s32.totalorder %s9, 1
        %s132 = scalar_select %p131, %s9, 1
        %s133 = smul.addr %s132, 8
        %s134 = scalar_lea.vmem %s0, %s133
      $region28: #{encoder_layer_forward.4} parent=23 // pred_fallthru
        _
    $region24: #{encoder_layer_forward.4} parent=5 // pred_fallthru
      _
    %p135 = scmp.le.s32.totalorder 1, %s9
    %p136 = scmp.lt.s32.totalorder %s9, 3
    %p137 = pnand %p135, %p136
    %p138 = pneg %p137
    // Predicated region
    $region29: #{encoder_layer_forward.4} parent=5 // pred_check
      _
    $region30: #{encoder_layer_forward.4} parent=5 // pred_check_branch
      %140 = sbr.rel (%p137) target = $region32
    $region31: #{encoder_layer_forward.4} parent=5 // pred_region
      %s141 = ssub.s32 %s9, 1
      %p142 = scmp.lt.s32.totalorder %s14, 1
      %s143 = scalar_select %p142, %s14, 1
      %s144 = smul.addr %s143, 8
      %s145 = scalar_lea.vmem %s0, %s144
      %p146 = pneg %p35
      %p147 = pneg %p32
      %p148 = pneg %p56
      %p149 = pneg %p53
      %p150 = pneg %p77
      %p151 = pneg %p74
      %p152 = pneg %p103
      %p153 = pneg %p100
      %p154 = scmp.lt.s32.totalorder %s14, 1
      %s155 = scalar_select %p154, %s14, 1
      %s156 = smul.addr %s155, 3
      %s157 = smul.addr %s156, 8
      %s158 = scalar_lea.vmem %s3, %s157
      %p159 = scmp.lt.s32.totalorder %s14, 1
      %s160 = scalar_select %p159, %s14, 1
      %s161 = smul.addr %s160, 8
      %s162 = scalar_lea.vmem %s0, %s161
      %p163 = scmp.lt.s32.totalorder %s14, 1
      %s164 = scalar_select %p163, %s14, 1
      %s165 = smul.addr %s164, 3
      %s166 = smul.addr %s165, 8
      %s167 = scalar_lea.vmem %s3, %s166
      %v168 = vld [vmem:[%s162] sm:$0xff]
      %v169 = vpack.c.bf16 %v168, %v168
      %v170 = vld [vmem:[%s1] sm:$0xff]
      %v171 = vld [vmem:[%s1 + $0x8] sm:$0xff]
      %v172 = vld [vmem:[%s1 + $0x10] sm:$0xff]
      %v173 = vld [vmem:[%s1 + $0x18] sm:$0xff]
      %v174 = vld [vmem:[%s1 + $0x20] sm:$0xff]
      %v175 = vld [vmem:[%s1 + $0x28] sm:$0xff]
      %v176 = vld [vmem:[%s1 + $0x30] sm:$0xff]
      %v177 = vld [vmem:[%s1 + $0x38] sm:$0xff]
      %v178 = vld [vmem:[%s1 + $0x40] sm:$0xff]
      %v179 = vld [vmem:[%s1 + $0x48] sm:$0xff]
      %v180 = vld [vmem:[%s1 + $0x50] sm:$0xff]
      %v181 = vld [vmem:[%s1 + $0x58] sm:$0xff]
      %v182 = vld [vmem:[%s1 + $0x60] sm:$0xff]
      %v183 = vld [vmem:[%s1 + $0x68] sm:$0xff]
      %v184 = vld [vmem:[%s1 + $0x70] sm:$0xff]
      %v185 = vld [vmem:[%s1 + $0x78] sm:$0xff]
      %v186 = vld [vmem:[%s1 + $0x80] sm:$0xff]
      %v187 = vld [vmem:[%s1 + $0x88] sm:$0xff]
      %v188 = vld [vmem:[%s1 + $0x90] sm:$0xff]
      %v189 = vld [vmem:[%s1 + $0x98] sm:$0xff]
      %v190 = vld [vmem:[%s1 + $0xa0] sm:$0xff]
      %v191 = vld [vmem:[%s1 + $0xa8] sm:$0xff]
      %v192 = vld [vmem:[%s1 + $0xb0] sm:$0xff]
      %v193 = vld [vmem:[%s1 + $0xb8] sm:$0xff]
      %v194 = vld [vmem:[%s1 + $0xc0] sm:$0xff]
      %v195 = vld [vmem:[%s1 + $0xc8] sm:$0xff]
      %v196 = vld [vmem:[%s1 + $0xd0] sm:$0xff]
      %v197 = vld [vmem:[%s1 + $0xd8] sm:$0xff]
      %v198 = vld [vmem:[%s1 + $0xe0] sm:$0xff]
      %v199 = vld [vmem:[%s1 + $0xe8] sm:$0xff]
      %v200 = vld [vmem:[%s1 + $0xf0] sm:$0xff]
      %v201 = vld [vmem:[%s1 + $0xf8] sm:$0xff]
      %v202 = vld [vmem:[%s1 + $0x100] sm:$0xff]
      %v203 = vld [vmem:[%s1 + $0x108] sm:$0xff]
      %v204 = vld [vmem:[%s1 + $0x110] sm:$0xff]
      %v205 = vld [vmem:[%s1 + $0x118] sm:$0xff]
      %v206 = vld [vmem:[%s1 + $0x120] sm:$0xff]
      %v207 = vld [vmem:[%s1 + $0x128] sm:$0xff]
      %v208 = vld [vmem:[%s1 + $0x130] sm:$0xff]
      %v209 = vld [vmem:[%s1 + $0x138] sm:$0xff]
      %v210 = vld [vmem:[%s1 + $0x140] sm:$0xff]
      %v211 = vld [vmem:[%s1 + $0x148] sm:$0xff]
      %v212 = vld [vmem:[%s1 + $0x150] sm:$0xff]
      %v213 = vld [vmem:[%s1 + $0x158] sm:$0xff]
      %v214 = vld [vmem:[%s1 + $0x160] sm:$0xff]
      %v215 = vld [vmem:[%s1 + $0x168] sm:$0xff]
      %v216 = vld [vmem:[%s1 + $0x170] sm:$0xff]
      %v217 = vld [vmem:[%s1 + $0x178] sm:$0xff]
      %v218 = vpack.c.bf16 %v173, %v170
      %v219 = vpack.c.bf16 %v174, %v171
      %v220 = vpack.c.bf16 %v175, %v172
      %v221 = vpack.c.bf16 %v179, %v176
      %v222 = vpack.c.bf16 %v180, %v177
      %v223 = vpack.c.bf16 %v181, %v178
      %v224 = vpack.c.bf16 %v185, %v182
      %v225 = vpack.c.bf16 %v186, %v183
      %v226 = vpack.c.bf16 %v187, %v184
      %v227 = vpack.c.bf16 %v191, %v188
      %v228 = vpack.c.bf16 %v192, %v189
      %v229 = vpack.c.bf16 %v193, %v190
      %v230 = vpack.c.bf16 %v197, %v194
      %v231 = vpack.c.bf16 %v198, %v195
      %v232 = vpack.c.bf16 %v199, %v196
      %v233 = vpack.c.bf16 %v203, %v200
      %v234 = vpack.c.bf16 %v204, %v201
      %v235 = vpack.c.bf16 %v205, %v202
      %v236 = vpack.c.bf16 %v209, %v206
      %v237 = vpack.c.bf16 %v210, %v207
      %v238 = vpack.c.bf16 %v211, %v208
      %v239 = vpack.c.bf16 %v215, %v212
      %v240 = vpack.c.bf16 %v216, %v213
      %v241 = vpack.c.bf16 %v217, %v214
      %v242 = vld [vmem:[%s2] sm:$0x7]
      %v244 = vperm.slane %v242, 0
      %v245 = vperm.slane %v242, 1
      %v246 = vperm.slane %v242, 2
      %250 = vmatpush.bf16.msra.mxu0 %v239
      %251 = vmatpush.bf16.msra.mxu0 %v236
      %252 = vmatpush.bf16.msra.mxu0 %v233
      %253 = vmatpush.bf16.msra.mxu0 %v230
      %254 = vmatpush.bf16.msra.mxu0 %v227
      %255 = vmatpush.bf16.msra.mxu0 %v224
      %256 = vmatpush.bf16.msra.mxu0 %v221
      %257 = vmatpush.bf16.msra.mxu0 %v218
      %258 = vmatmul.bf16.gmra.mxu0 %v169
      %v259 = vpop.f32.mrf.mxu0
      %v260 = vadd.f32 %v244, %v259
      %v261 = vpop.f32.mrf.mxu0
      %262 = vdwg.mxu0
      %263 = vmatpush.bf16.msra.mxu0 %v240
      %264 = vmatpush.bf16.msra.mxu0 %v237
      %265 = vmatpush.bf16.msra.mxu0 %v234
      %266 = vmatpush.bf16.msra.mxu0 %v231
      %267 = vmatpush.bf16.msra.mxu0 %v228
      %268 = vmatpush.bf16.msra.mxu0 %v225
      %269 = vmatpush.bf16.msra.mxu0 %v222
      %270 = vmatpush.bf16.msra.mxu0 %v219
      %271 = vmatmul.bf16.gmra.mxu0 %v169
      %v272 = vpop.f32.mrf.mxu0
      %v273 = vadd.f32 %v245, %v272
      %v274 = vpop.f32.mrf.mxu0
      %275 = vdwg.mxu0
      %276 = vmatpush.bf16.msra.mxu0 %v241
      %277 = vmatpush.bf16.msra.mxu0 %v238
      %278 = vmatpush.bf16.msra.mxu0 %v235
      %279 = vmatpush.bf16.msra.mxu0 %v232
      %280 = vmatpush.bf16.msra.mxu0 %v229
      %281 = vmatpush.bf16.msra.mxu0 %v226
      %282 = vmatpush.bf16.msra.mxu0 %v223
      %283 = vmatpush.bf16.msra.mxu0 %v220
      %284 = vmatmul.bf16.gmra.mxu0 %v169
      %v285 = vpop.f32.mrf.mxu0
      %v286 = vadd.f32 %v246, %v285
      %v287 = vpop.f32.mrf.mxu0
      %288 = vdwg.mxu0
      %289 = vst [vmem:[%s167] sm:$0xff] %v260
      %290 = vst [vmem:[%s167 + $0x8] sm:$0xff] %v273
      %291 = vst [vmem:[%s167 + $0x10] sm:$0xff] %v286
      %p292 = scmp.lt.s32.totalorder %s14, 1
      %s293 = scalar_select %p292, %s14, 1
      %s294 = smul.addr %s293, 3
      %s295 = smul.addr %s294, 8
      %s296 = scalar_lea.vmem %s3, %s295
      // Predicated region
      $region33: #{encoder_layer_forward.4} parent=31 // pred_check
        %p297 = pneg %p100
      $region34: #{encoder_layer_forward.4} parent=31 // pred_check_branch
        %299 = sbr.rel (%p297) target = $region36
      $region35: #{encoder_layer_forward.4} parent=31 // pred_region
        _
      $region36: #{encoder_layer_forward.4} parent=31 // pred_fallthru
        _
    $region32: #{encoder_layer_forward.4} parent=5 // pred_fallthru
      _
    %p300 = scmp.le.s32.totalorder 2, %s9
    // Predicated region
    $region37: #{encoder_layer_forward.4} parent=5 // pred_check
      %p301 = pneg %p300
    $region38: #{encoder_layer_forward.4} parent=5 // pred_check_branch
      %303 = sbr.rel (%p301) target = $region40
    $region39: #{encoder_layer_forward.4} parent=5 // pred_region
      %s304 = ssub.s32 %s9, 2
      // Predicated region
      $region41: #{encoder_layer_forward.4} parent=39 // pred_check
        %p305 = pneg %p106
      $region42: #{encoder_layer_forward.4} parent=39 // pred_check_branch
        %307 = sbr.rel (%p305) target = $region44
      $region43: #{encoder_layer_forward.4} parent=39 // pred_region
        %p308 = scmp.lt.s32.totalorder %s15, 1
        %s309 = scalar_select %p308, %s15, 1
        %s310 = smul.addr %s309, 3
        %s311 = smul.addr %s310, 8
        %s312 = scalar_lea.vmem %s3, %s311
      $region44: #{encoder_layer_forward.4} parent=39 // pred_fallthru
        _
    $region40: #{encoder_layer_forward.4} parent=5 // pred_fallthru
      _
  $region6: #{encoder_layer_forward.4} parent=0 // loop_footer
    %s13 = sadd.s32 1, %s9
  $region7: #{encoder_layer_forward.4} parent=0 // loop_footer_branch
    %8 = sbr.rel target = $region3
  $region8: #{encoder_layer_forward.4} parent=0 // loop_exit
    _

// kernel: encoder_layer_forward.6
$region0: #{encoder_layer_forward.6}
  #allocation0 [shape = 'u32[]', space=smem, size = 0x4, offset = 0x4, fixed_abs, tag = 'smem constant byte address 0x4 - core index']
  #allocation1 [shape = 'u32[72,128]{1,0:T(1,128)}', space=vmem, size = 0x9000, scoped, tag = 'internal scratch']
  %s0 = inlined_call_operand.vmem [shape: f32[16,128], index: 0, kind: input, shape index: {}]
  %s1 = inlined_call_operand.vmem [shape: f32[16,128], index: 1, kind: input, shape index: {}]
  %s2 = inlined_call_operand.vmem [shape: f32[128,128], index: 2, kind: input, shape index: {}]
  %s3 = inlined_call_operand.vmem [shape: f32[1,128], index: 3, kind: input, shape index: {}]
  %s4 = inlined_call_operand.vmem [shape: f32[1,128], index: 4, kind: input, shape index: {}]
  %s5 = inlined_call_operand.vmem [shape: f32[1,128], index: 5, kind: input, shape index: {}]
  %s6 = inlined_call_operand.vmem [shape: f32[16,128], index: 6, kind: output, shape index: {}]
  %s7 = sld [smem:[#allocation0]]
  $region57: #{encoder_layer_forward.6} parent=0
    _
  %s9 = ssub.s32 1, %s7
  %s10 = scalar_select 0, %s9, %s7
  loop: start=0, step=1, limit=4
  $region2: #{encoder_layer_forward.6} parent=0 // loop_pre_header
    _
  $region3: #{encoder_layer_forward.6} parent=0 // loop_header
    %s12 = sphi 0, %s16
    %p13 = scmp.ge.s32.totalorder %s12, 4
    %s22 = sphi 0, %s24
    %s25 = sphi 0, %s22
    %s26 = sphi 0, %s25
    %s42 = sphi 0, %s26
    %s48 = sphi 0, %s50
    %s51 = sphi 0, %s48
    %s52 = sphi 0, %s51
    %s68 = sphi 0, %s52
    %s72 = sphi 0, %s72
    %s74 = sphi 0, %s72
    %s75 = sphi 0, %s74
    %s89 = sphi 0, %s75
    %s93 = sphi 0, %s93
    %s95 = sphi 0, %s93
    %s96 = sphi 0, %s95
    %s110 = sphi 0, %s96
    %s114 = sphi 0, %s114
    %s116 = sphi 0, %s114
    %s117 = sphi 0, %s116
    %s131 = sphi 0, %s117
    %s135 = sphi 0, %s135
    %s137 = sphi 0, %s135
    %s138 = sphi 0, %s137
    %s152 = sphi 0, %s138
    %s158 = sphi 0, %s160
    %s161 = sphi 0, %s158
    %s162 = sphi 0, %s161
    %s178 = sphi 0, %s162
  $region4: #{encoder_layer_forward.6} parent=0 // loop_header_branch
    %15 = sbr.rel (%p13) target = $region8
  $region5: #{encoder_layer_forward.6} parent=0 // loop_body
    %s17 = ssub.s32 %s12, 1
    %s18 = ssub.s32 %s12, 2
    %s19 = sadd.s32 %s12, 1
    %s20 = ssub.s32 %s12, %s19
    %p21 = scmp.eq.s32.totalorder %s20, 0
    %s23 = sadd.s32 %s22, 1
    %s24 = scalar_select %p21, %s22, %s23
    %p27 = pneg %p21
    %p28 = scmp.eq.s32.totalorder %s12, 1
    %p29 = por %p27, %p28
    %p30 = scmp.ne.s32.totalorder %s22, %s25
    %p31 = scmp.eq.s32.totalorder %s12, 0
    %p32 = por %p30, %p31
    %p33 = scmp.ne.s32.totalorder %s22, %s25
    %p34 = scmp.eq.s32.totalorder %s17, 1
    %p35 = por %p33, %p34
    %p36 = scmp.ne.s32.totalorder %s25, %s26
    %p37 = scmp.eq.s32.totalorder %s17, 0
    %p38 = por %p36, %p37
    %p39 = scmp.ne.s32.totalorder %s25, %s26
    %p40 = scmp.eq.s32.totalorder %s18, 1
    %p41 = por %p39, %p40
    %p43 = scmp.ne.s32.totalorder %s26, %s42
    %p44 = scmp.eq.s32.totalorder %s18, 0
    %p45 = por %p43, %p44
    %s46 = ssub.s32 %s12, %s19
    %p47 = scmp.eq.s32.totalorder %s46, 0
    %s49 = sadd.s32 %s48, 1
    %s50 = scalar_select %p47, %s48, %s49
    %p53 = pneg %p47
    %p54 = scmp.eq.s32.totalorder %s12, 1
    %p55 = por %p53, %p54
    %p56 = scmp.ne.s32.totalorder %s48, %s51
    %p57 = scmp.eq.s32.totalorder %s12, 0
    %p58 = por %p56, %p57
    %p59 = scmp.ne.s32.totalorder %s48, %s51
    %p60 = scmp.eq.s32.totalorder %s17, 1
    %p61 = por %p59, %p60
    %p62 = scmp.ne.s32.totalorder %s51, %s52
    %p63 = scmp.eq.s32.totalorder %s17, 0
    %p64 = por %p62, %p63
    %p65 = scmp.ne.s32.totalorder %s51, %s52
    %p66 = scmp.eq.s32.totalorder %s18, 1
    %p67 = por %p65, %p66
    %p69 = scmp.ne.s32.totalorder %s52, %s68
    %p70 = scmp.eq.s32.totalorder %s18, 0
    %p71 = por %p69, %p70
    %s73 = sadd.s32 %s72, 1
    %p76 = scmp.eq.s32.totalorder %s12, 1
    %p77 = scmp.ne.s32.totalorder %s72, %s74
    %p78 = scmp.eq.s32.totalorder %s12, 0
    %p79 = por %p77, %p78
    %p80 = scmp.ne.s32.totalorder %s72, %s74
    %p81 = scmp.eq.s32.totalorder %s17, 1
    %p82 = por %p80, %p81
    %p83 = scmp.ne.s32.totalorder %s74, %s75
    %p84 = scmp.eq.s32.totalorder %s17, 0
    %p85 = por %p83, %p84
    %p86 = scmp.ne.s32.totalorder %s74, %s75
    %p87 = scmp.eq.s32.totalorder %s18, 1
    %p88 = por %p86, %p87
    %p90 = scmp.ne.s32.totalorder %s75, %s89
    %p91 = scmp.eq.s32.totalorder %s18, 0
    %p92 = por %p90, %p91
    %s94 = sadd.s32 %s93, 1
    %p97 = scmp.eq.s32.totalorder %s12, 1
    %p98 = scmp.ne.s32.totalorder %s93, %s95
    %p99 = scmp.eq.s32.totalorder %s12, 0
    %p100 = por %p98, %p99
    %p101 = scmp.ne.s32.totalorder %s93, %s95
    %p102 = scmp.eq.s32.totalorder %s17, 1
    %p103 = por %p101, %p102
    %p104 = scmp.ne.s32.totalorder %s95, %s96
    %p105 = scmp.eq.s32.totalorder %s17, 0
    %p106 = por %p104, %p105
    %p107 = scmp.ne.s32.totalorder %s95, %s96
    %p108 = scmp.eq.s32.totalorder %s18, 1
    %p109 = por %p107, %p108
    %p111 = scmp.ne.s32.totalorder %s96, %s110
    %p112 = scmp.eq.s32.totalorder %s18, 0
    %p113 = por %p111, %p112
    %s115 = sadd.s32 %s114, 1
    %p118 = scmp.eq.s32.totalorder %s12, 1
    %p119 = scmp.ne.s32.totalorder %s114, %s116
    %p120 = scmp.eq.s32.totalorder %s12, 0
    %p121 = por %p119, %p120
    %p122 = scmp.ne.s32.totalorder %s114, %s116
    %p123 = scmp.eq.s32.totalorder %s17, 1
    %p124 = por %p122, %p123
    %p125 = scmp.ne.s32.totalorder %s116, %s117
    %p126 = scmp.eq.s32.totalorder %s17, 0
    %p127 = por %p125, %p126
    %p128 = scmp.ne.s32.totalorder %s116, %s117
    %p129 = scmp.eq.s32.totalorder %s18, 1
    %p130 = por %p128, %p129
    %p132 = scmp.ne.s32.totalorder %s117, %s131
    %p133 = scmp.eq.s32.totalorder %s18, 0
    %p134 = por %p132, %p133
    %s136 = sadd.s32 %s135, 1
    %p139 = scmp.eq.s32.totalorder %s12, 1
    %p140 = scmp.ne.s32.totalorder %s135, %s137
    %p141 = scmp.eq.s32.totalorder %s12, 0
    %p142 = por %p140, %p141
    %p143 = scmp.ne.s32.totalorder %s135, %s137
    %p144 = scmp.eq.s32.totalorder %s17, 1
    %p145 = por %p143, %p144
    %p146 = scmp.ne.s32.totalorder %s137, %s138
    %p147 = scmp.eq.s32.totalorder %s17, 0
    %p148 = por %p146, %p147
    %p149 = scmp.ne.s32.totalorder %s137, %s138
    %p150 = scmp.eq.s32.totalorder %s18, 1
    %p151 = por %p149, %p150
    %p153 = scmp.ne.s32.totalorder %s138, %s152
    %p154 = scmp.eq.s32.totalorder %s18, 0
    %p155 = por %p153, %p154
    %s156 = ssub.s32 %s12, %s19
    %p157 = scmp.eq.s32.totalorder %s156, 0
    %s159 = sadd.s32 %s158, 1
    %s160 = scalar_select %p157, %s158, %s159
    %p163 = pneg %p157
    %p164 = scmp.eq.s32.totalorder %s12, 1
    %p165 = por %p163, %p164
    %p166 = scmp.ne.s32.totalorder %s158, %s161
    %p167 = scmp.eq.s32.totalorder %s12, 0
    %p168 = por %p166, %p167
    %p169 = scmp.ne.s32.totalorder %s158, %s161
    %p170 = scmp.eq.s32.totalorder %s17, 1
    %p171 = por %p169, %p170
    %p172 = scmp.ne.s32.totalorder %s161, %s162
    %p173 = scmp.eq.s32.totalorder %s17, 0
    %p174 = por %p172, %p173
    %p175 = scmp.ne.s32.totalorder %s161, %s162
    %p176 = scmp.eq.s32.totalorder %s18, 1
    %p177 = por %p175, %p176
    %p179 = scmp.ne.s32.totalorder %s162, %s178
    %p180 = scmp.eq.s32.totalorder %s18, 0
    %p181 = por %p179, %p180
    %p182 = scmp.le.s32.totalorder 1, %s12
    %p183 = scmp.lt.s32.totalorder %s12, 3
    %p184 = pnand %p182, %p183
    %p185 = pneg %p184
    // Predicated region
    $region9: #{encoder_layer_forward.6} parent=5 // pred_check
      _
    $region10: #{encoder_layer_forward.6} parent=5 // pred_check_branch
      %187 = sbr.rel (%p184) target = $region12
    $region11: #{encoder_layer_forward.6} parent=5 // pred_region
      %s188 = ssub.s32 %s12, 1
      // Predicated region
      $region13: #{encoder_layer_forward.6} parent=11 // pred_check
        %p189 = pneg %p85
      $region14: #{encoder_layer_forward.6} parent=11 // pred_check_branch
        %191 = sbr.rel (%p189) target = $region16
      $region15: #{encoder_layer_forward.6} parent=11 // pred_region
        _
      $region16: #{encoder_layer_forward.6} parent=11 // pred_fallthru
        _
      // Predicated region
      $region17: #{encoder_layer_forward.6} parent=11 // pred_check
        %p192 = pneg %p106
      $region18: #{encoder_layer_forward.6} parent=11 // pred_check_branch
        %194 = sbr.rel (%p192) target = $region20
      $region19: #{encoder_layer_forward.6} parent=11 // pred_region
        _
      $region20: #{encoder_layer_forward.6} parent=11 // pred_fallthru
        _
      // Predicated region
      $region21: #{encoder_layer_forward.6} parent=11 // pred_check
        %p195 = pneg %p127
      $region22: #{encoder_layer_forward.6} parent=11 // pred_check_branch
        %197 = sbr.rel (%p195) target = $region24
      $region23: #{encoder_layer_forward.6} parent=11 // pred_region
        _
      $region24: #{encoder_layer_forward.6} parent=11 // pred_fallthru
        _
      // Predicated region
      $region25: #{encoder_layer_forward.6} parent=11 // pred_check
        %p198 = pneg %p148
      $region26: #{encoder_layer_forward.6} parent=11 // pred_check_branch
        %200 = sbr.rel (%p198) target = $region28
      $region27: #{encoder_layer_forward.6} parent=11 // pred_region
        _
      $region28: #{encoder_layer_forward.6} parent=11 // pred_fallthru
        _
    $region12: #{encoder_layer_forward.6} parent=5 // pred_fallthru
      _
    %p201 = scmp.lt.s32.totalorder %s12, 2
    // Predicated region
    $region29: #{encoder_layer_forward.6} parent=5 // pred_check
      %p202 = pneg %p201
    $region30: #{encoder_layer_forward.6} parent=5 // pred_check_branch
      %204 = sbr.rel (%p202) target = $region32
    $region31: #{encoder_layer_forward.6} parent=5 // pred_region
      // Predicated region
      $region33: #{encoder_layer_forward.6} parent=31 // pred_check
        %p205 = pneg %p32
      $region34: #{encoder_layer_forward.6} parent=31 // pred_check_branch
        %207 = sbr.rel (%p205) target = $region36
      $region35: #{encoder_layer_forward.6} parent=31 // pred_region
        %p208 = scmp.lt.s32.totalorder %s12, 1
        %s209 = scalar_select %p208, %s12, 1
        %s210 = smul.addr %s209, 8
        %s211 = scalar_lea.vmem %s0, %s210
      $region36: #{encoder_layer_forward.6} parent=31 // pred_fallthru
        _
      // Predicated region
      $region37: #{encoder_layer_forward.6} parent=31 // pred_check
        %p212 = pneg %p58
      $region38: #{encoder_layer_forward.6} parent=31 // pred_check_branch
        %214 = sbr.rel (%p212) target = $region40
      $region39: #{encoder_layer_forward.6} parent=31 // pred_region
        %p215 = scmp.lt.s32.totalorder %s12, 1
        %s216 = scalar_select %p215, %s12, 1
        %s217 = smul.addr %s216, 8
        %s218 = scalar_lea.vmem %s1, %s217
      $region40: #{encoder_layer_forward.6} parent=31 // pred_fallthru
        _
    $region32: #{encoder_layer_forward.6} parent=5 // pred_fallthru
      _
    %p219 = scmp.le.s32.totalorder 1, %s12
    %p220 = scmp.lt.s32.totalorder %s12, 3
    %p221 = pnand %p219, %p220
    %p222 = pneg %p221
    // Predicated region
    $region41: #{encoder_layer_forward.6} parent=5 // pred_check
      _
    $region42: #{encoder_layer_forward.6} parent=5 // pred_check_branch
      %224 = sbr.rel (%p221) target = $region44
    $region43: #{encoder_layer_forward.6} parent=5 // pred_region
      %s225 = ssub.s32 %s12, 1
      %p226 = scmp.lt.s32.totalorder %s17, 1
      %s227 = scalar_select %p226, %s17, 1
      %s228 = smul.addr %s227, 8
      %s229 = scalar_lea.vmem %s0, %s228
      %p230 = pneg %p38
      %p231 = pneg %p35
      %p232 = scmp.lt.s32.totalorder %s17, 1
      %s233 = scalar_select %p232, %s17, 1
      %s234 = smul.addr %s233, 8
      %s235 = scalar_lea.vmem %s1, %s234
      %p236 = pneg %p64
      %p237 = pneg %p61
      %p238 = pneg %p85
      %p239 = pneg %p82
      %p240 = pneg %p106
      %p241 = pneg %p103
      %p242 = pneg %p127
      %p243 = pneg %p124
      %p244 = pneg %p148
      %p245 = pneg %p145
      %p246 = pneg %p174
      %p247 = pneg %p171
      %p248 = scmp.lt.s32.totalorder %s17, 1
      %s249 = scalar_select %p248, %s17, 1
      %s250 = smul.addr %s249, 8
      %s251 = scalar_lea.vmem %s6, %s250
      %p252 = scmp.lt.s32.totalorder %s17, 1
      %s253 = scalar_select %p252, %s17, 1
      %s254 = smul.addr %s253, 8
      %s255 = scalar_lea.vmem %s0, %s254
      %p256 = scmp.lt.s32.totalorder %s17, 1
      %s257 = scalar_select %p256, %s17, 1
      %s258 = smul.addr %s257, 8
      %s259 = scalar_lea.vmem %s1, %s258
      %p260 = scmp.lt.s32.totalorder %s17, 1
      %s261 = scalar_select %p260, %s17, 1
      %s262 = smul.addr %s261, 8
      %s263 = scalar_lea.vmem %s6, %s262
      %v264 = vld [vmem:[%s255] sm:$0xff]
      %v265 = vpack.c.bf16 %v264, %v264
      %v266 = vld [vmem:[%s2] sm:$0xff]
      %v267 = vld [vmem:[%s2 + $0x8] sm:$0xff]
      %v268 = vld [vmem:[%s2 + $0x10] sm:$0xff]
      %v269 = vld [vmem:[%s2 + $0x18] sm:$0xff]
      %v270 = vld [vmem:[%s2 + $0x20] sm:$0xff]
      %v271 = vld [vmem:[%s2 + $0x28] sm:$0xff]
      %v272 = vld [vmem:[%s2 + $0x30] sm:$0xff]
      %v273 = vld [vmem:[%s2 + $0x38] sm:$0xff]
      %v274 = vld [vmem:[%s2 + $0x40] sm:$0xff]
      %v275 = vld [vmem:[%s2 + $0x48] sm:$0xff]
      %v276 = vld [vmem:[%s2 + $0x50] sm:$0xff]
      %v277 = vld [vmem:[%s2 + $0x58] sm:$0xff]
      %v278 = vld [vmem:[%s2 + $0x60] sm:$0xff]
      %v279 = vld [vmem:[%s2 + $0x68] sm:$0xff]
      %v280 = vld [vmem:[%s2 + $0x70] sm:$0xff]
      %v281 = vld [vmem:[%s2 + $0x78] sm:$0xff]
      %v282 = vpack.c.bf16 %v267, %v266
      %v283 = vpack.c.bf16 %v269, %v268
      %v284 = vpack.c.bf16 %v271, %v270
      %v285 = vpack.c.bf16 %v273, %v272
      %v286 = vpack.c.bf16 %v275, %v274
      %v287 = vpack.c.bf16 %v277, %v276
      %v288 = vpack.c.bf16 %v279, %v278
      %v289 = vpack.c.bf16 %v281, %v280
      %v290 = vld [vmem:[%s3] sm:$0x1]
      %v292 = vperm.slane %v290, 0
      %294 = vmatpush.bf16.msra.mxu0 %v289
      %295 = vmatpush.bf16.msra.mxu0 %v288
      %296 = vmatpush.bf16.msra.mxu0 %v287
      %297 = vmatpush.bf16.msra.mxu0 %v286
      %298 = vmatpush.bf16.msra.mxu0 %v285
      %299 = vmatpush.bf16.msra.mxu0 %v284
      %300 = vmatpush.bf16.msra.mxu0 %v283
      %301 = vmatpush.bf16.msra.mxu0 %v282
      %302 = vmatmul.bf16.gmra.mxu0 %v265
      %v303 = vpop.f32.mrf.mxu0
      %v304 = vadd.f32 %v292, %v303
      %v305 = vpop.f32.mrf.mxu0
      %306 = vdwg.mxu0
      %v307 = vld [vmem:[%s259] sm:$0xff]
      %v308 = vadd.f32 %v304, %v307
      %v309 = vld [vmem:[%s4] sm:$0x1]
      %v310 = vld [vmem:[%s5] sm:$0x1]
      %311 = vadd.xlane.f32.xlu0 %v308
      %v312 = vpop.xlane.xlu0 %311
      %v313 = vrcp.pop 128.0
      %v314 = vmul.f32 128.0, %v313
      %v315 = vsub.f32 1.0, %v314
      %v316 = vmul.f32 %v313, %v315
      %v317 = vadd.f32 %v313, %v316
      %vm318 = vweird.f32 %v313
      %v319 = vsel %vm318, %v313, %v317
      %v320 = vmul.f32 %v312, %v319
      %v321 = vsub.f32 %v308, %v320
      %v322 = vmul.f32 %v321, %v321
      %323 = vadd.xlane.f32.xlu0 %v322
      %v324 = vpop.xlane.xlu0 %323
      %v325 = vmul.f32 %v324, %v319
      %v326 = vadd.f32 %v325, 1e-12
      %v327 = vrsqrt.pop %v326
      %v328 = vmul.f32 %v327, %v326
      %v329 = vmul.f32 %v328, %v327
      %v330 = vmul.f32 0.5, %v329
      %v331 = vsub.f32 1.5, %v330
      %v332 = vmul.f32 %v327, %v331
      %vm333 = vweird.f32 %v326
      %vm334 = vweird.f32 %v327
      %vm335 = vmor %vm333, %vm334
      %v336 = vsel %vm335, %v327, %v332
      %v337 = vmul.f32 %v321, %v336
      %v339 = vperm.slane %v309, 0
      %v341 = vmul.f32 %v339, %v337
      %v343 = vperm.slane %v310, 0
      %v345 = vadd.f32 %v341, %v343
      %346 = vst [vmem:[%s263] sm:$0xff] %v345
      %p347 = scmp.lt.s32.totalorder %s17, 1
      %s348 = scalar_select %p347, %s17, 1
      %s349 = smul.addr %s348, 8
      %s350 = scalar_lea.vmem %s6, %s349
      // Predicated region
      $region45: #{encoder_layer_forward.6} parent=43 // pred_check
        %p351 = pneg %p171
      $region46: #{encoder_layer_forward.6} parent=43 // pred_check_branch
        %353 = sbr.rel (%p351) target = $region48
      $region47: #{encoder_layer_forward.6} parent=43 // pred_region
        _
      $region48: #{encoder_layer_forward.6} parent=43 // pred_fallthru
        _
    $region44: #{encoder_layer_forward.6} parent=5 // pred_fallthru
      _
    %p354 = scmp.le.s32.totalorder 2, %s12
    // Predicated region
    $region49: #{encoder_layer_forward.6} parent=5 // pred_check
      %p355 = pneg %p354
    $region50: #{encoder_layer_forward.6} parent=5 // pred_check_branch
      %357 = sbr.rel (%p355) target = $region52
    $region51: #{encoder_layer_forward.6} parent=5 // pred_region
      %s358 = ssub.s32 %s12, 2
      // Predicated region
      $region53: #{encoder_layer_forward.6} parent=51 // pred_check
        %p359 = pneg %p177
      $region54: #{encoder_layer_forward.6} parent=51 // pred_check_branch
        %361 = sbr.rel (%p359) target = $region56
      $region55: #{encoder_layer_forward.6} parent=51 // pred_region
        %p362 = scmp.lt.s32.totalorder %s18, 1
        %s363 = scalar_select %p362, %s18, 1
        %s364 = smul.addr %s363, 8
        %s365 = scalar_lea.vmem %s6, %s364
      $region56: #{encoder_layer_forward.6} parent=51 // pred_fallthru
        _
    $region52: #{encoder_layer_forward.6} parent=5 // pred_fallthru
      _
  $region6: #{encoder_layer_forward.6} parent=0 // loop_footer
    %s16 = sadd.s32 1, %s12
  $region7: #{encoder_layer_forward.6} parent=0 // loop_footer_branch
    %11 = sbr.rel target = $region3
  $region8: #{encoder_layer_forward.6} parent=0 // loop_exit
    _

// kernel: encoder_layer_forward.7
$region0: #{encoder_layer_forward.7}
  #allocation0 [shape = 'u32[]', space=smem, size = 0x4, offset = 0x4, fixed_abs, tag = 'smem constant byte address 0x4 - core index']
  #allocation1 [shape = 'u32[72,128]{1,0:T(1,128)}', space=vmem, size = 0x9000, scoped, tag = 'internal scratch']
  %s0 = inlined_call_operand.vmem [shape: f32[16,128], index: 0, kind: input, shape index: {}]
  %s1 = inlined_call_operand.vmem [shape: f32[128,256], index: 1, kind: input, shape index: {}]
  %s2 = inlined_call_operand.vmem [shape: f32[1,256], index: 2, kind: input, shape index: {}]
  %s3 = inlined_call_operand.vmem [shape: f32[256,128], index: 3, kind: input, shape index: {}]
  %s4 = inlined_call_operand.vmem [shape: f32[1,128], index: 4, kind: input, shape index: {}]
  %s5 = inlined_call_operand.vmem [shape: f32[1,128], index: 5, kind: input, shape index: {}]
  %s6 = inlined_call_operand.vmem [shape: f32[1,128], index: 6, kind: input, shape index: {}]
  %s7 = inlined_call_operand.hbm [shape: f32[16,128], index: 7, kind: output, shape index: {}]
  %s8 = sld [smem:[#allocation0]]
  $region61: #{encoder_layer_forward.7} parent=0
    _
  %s10 = ssub.s32 1, %s8
  %s11 = scalar_select 0, %s10, %s8
  $region1: #{encoder_layer_forward.7} parent=0
    #allocation2 [shape = 'u8[8192]{0}', space=vmem, size = 0x2000, scoped, tag = 'output window, operand 0']
    #allocation3 [shape = 's32[2]{0}', space=sflag, size = 0x8, scoped, tag = 'scoped memory for encoder_layer_forward.7']
    %12 = vsyncpa [#allocation3], 0
    %s13 = scalar_lea.sflag [#allocation3], 1
    %14 = vsyncpa %s13, 0
    loop: start=0, step=1, limit=4
    $region2: #{encoder_layer_forward.7} parent=1 // loop_pre_header
      _
    $region3: #{encoder_layer_forward.7} parent=1 // loop_header
      %s16 = sphi 0, %s20
      %p17 = scmp.ge.s32.totalorder %s16, 4
      %s26 = sphi 0, %s28
      %s29 = sphi 0, %s26
      %s30 = sphi 0, %s29
      %s46 = sphi 0, %s30
      %s50 = sphi 0, %s50
      %s52 = sphi 0, %s50
      %s53 = sphi 0, %s52
      %s67 = sphi 0, %s53
      %s71 = sphi 0, %s71
      %s73 = sphi 0, %s71
      %s74 = sphi 0, %s73
      %s88 = sphi 0, %s74
      %s92 = sphi 0, %s92
      %s94 = sphi 0, %s92
      %s95 = sphi 0, %s94
      %s109 = sphi 0, %s95
      %s113 = sphi 0, %s113
      %s115 = sphi 0, %s113
      %s116 = sphi 0, %s115
      %s130 = sphi 0, %s116
      %s134 = sphi 0, %s134
      %s136 = sphi 0, %s134
      %s137 = sphi 0, %s136
      %s151 = sphi 0, %s137
      %s155 = sphi 0, %s155
      %s157 = sphi 0, %s155
      %s158 = sphi 0, %s157
      %s172 = sphi 0, %s158
      %s178 = sphi 0, %s180
      %s181 = sphi 0, %s178
      %s182 = sphi 0, %s181
      %s198 = sphi 0, %s182
    $region4: #{encoder_layer_forward.7} parent=1 // loop_header_branch
      %19 = sbr.rel (%p17) target = $region8
    $region5: #{encoder_layer_forward.7} parent=1 // loop_body
      %s21 = ssub.s32 %s16, 1
      %s22 = ssub.s32 %s16, 2
      %s23 = sadd.s32 %s16, 1
      %s24 = ssub.s32 %s16, %s23
      %p25 = scmp.eq.s32.totalorder %s24, 0
      %s27 = sadd.s32 %s26, 1
      %s28 = scalar_select %p25, %s26, %s27
      %p31 = pneg %p25
      %p32 = scmp.eq.s32.totalorder %s16, 1
      %p33 = por %p31, %p32
      %p34 = scmp.ne.s32.totalorder %s26, %s29
      %p35 = scmp.eq.s32.totalorder %s16, 0
      %p36 = por %p34, %p35
      %p37 = scmp.ne.s32.totalorder %s26, %s29
      %p38 = scmp.eq.s32.totalorder %s21, 1
      %p39 = por %p37, %p38
      %p40 = scmp.ne.s32.totalorder %s29, %s30
      %p41 = scmp.eq.s32.totalorder %s21, 0
      %p42 = por %p40, %p41
      %p43 = scmp.ne.s32.totalorder %s29, %s30
      %p44 = scmp.eq.s32.totalorder %s22, 1
      %p45 = por %p43, %p44
      %p47 = scmp.ne.s32.totalorder %s30, %s46
      %p48 = scmp.eq.s32.totalorder %s22, 0
      %p49 = por %p47, %p48
      %s51 = sadd.s32 %s50, 1
      %p54 = scmp.eq.s32.totalorder %s16, 1
      %p55 = scmp.ne.s32.totalorder %s50, %s52
      %p56 = scmp.eq.s32.totalorder %s16, 0
      %p57 = por %p55, %p56
      %p58 = scmp.ne.s32.totalorder %s50, %s52
      %p59 = scmp.eq.s32.totalorder %s21, 1
      %p60 = por %p58, %p59
      %p61 = scmp.ne.s32.totalorder %s52, %s53
      %p62 = scmp.eq.s32.totalorder %s21, 0
      %p63 = por %p61, %p62
      %p64 = scmp.ne.s32.totalorder %s52, %s53
      %p65 = scmp.eq.s32.totalorder %s22, 1
      %p66 = por %p64, %p65
      %p68 = scmp.ne.s32.totalorder %s53, %s67
      %p69 = scmp.eq.s32.totalorder %s22, 0
      %p70 = por %p68, %p69
      %s72 = sadd.s32 %s71, 1
      %p75 = scmp.eq.s32.totalorder %s16, 1
      %p76 = scmp.ne.s32.totalorder %s71, %s73
      %p77 = scmp.eq.s32.totalorder %s16, 0
      %p78 = por %p76, %p77
      %p79 = scmp.ne.s32.totalorder %s71, %s73
      %p80 = scmp.eq.s32.totalorder %s21, 1
      %p81 = por %p79, %p80
      %p82 = scmp.ne.s32.totalorder %s73, %s74
      %p83 = scmp.eq.s32.totalorder %s21, 0
      %p84 = por %p82, %p83
      %p85 = scmp.ne.s32.totalorder %s73, %s74
      %p86 = scmp.eq.s32.totalorder %s22, 1
      %p87 = por %p85, %p86
      %p89 = scmp.ne.s32.totalorder %s74, %s88
      %p90 = scmp.eq.s32.totalorder %s22, 0
      %p91 = por %p89, %p90
      %s93 = sadd.s32 %s92, 1
      %p96 = scmp.eq.s32.totalorder %s16, 1
      %p97 = scmp.ne.s32.totalorder %s92, %s94
      %p98 = scmp.eq.s32.totalorder %s16, 0
      %p99 = por %p97, %p98
      %p100 = scmp.ne.s32.totalorder %s92, %s94
      %p101 = scmp.eq.s32.totalorder %s21, 1
      %p102 = por %p100, %p101
      %p103 = scmp.ne.s32.totalorder %s94, %s95
      %p104 = scmp.eq.s32.totalorder %s21, 0
      %p105 = por %p103, %p104
      %p106 = scmp.ne.s32.totalorder %s94, %s95
      %p107 = scmp.eq.s32.totalorder %s22, 1
      %p108 = por %p106, %p107
      %p110 = scmp.ne.s32.totalorder %s95, %s109
      %p111 = scmp.eq.s32.totalorder %s22, 0
      %p112 = por %p110, %p111
      %s114 = sadd.s32 %s113, 1
      %p117 = scmp.eq.s32.totalorder %s16, 1
      %p118 = scmp.ne.s32.totalorder %s113, %s115
      %p119 = scmp.eq.s32.totalorder %s16, 0
      %p120 = por %p118, %p119
      %p121 = scmp.ne.s32.totalorder %s113, %s115
      %p122 = scmp.eq.s32.totalorder %s21, 1
      %p123 = por %p121, %p122
      %p124 = scmp.ne.s32.totalorder %s115, %s116
      %p125 = scmp.eq.s32.totalorder %s21, 0
      %p126 = por %p124, %p125
      %p127 = scmp.ne.s32.totalorder %s115, %s116
      %p128 = scmp.eq.s32.totalorder %s22, 1
      %p129 = por %p127, %p128
      %p131 = scmp.ne.s32.totalorder %s116, %s130
      %p132 = scmp.eq.s32.totalorder %s22, 0
      %p133 = por %p131, %p132
      %s135 = sadd.s32 %s134, 1
      %p138 = scmp.eq.s32.totalorder %s16, 1
      %p139 = scmp.ne.s32.totalorder %s134, %s136
      %p140 = scmp.eq.s32.totalorder %s16, 0
      %p141 = por %p139, %p140
      %p142 = scmp.ne.s32.totalorder %s134, %s136
      %p143 = scmp.eq.s32.totalorder %s21, 1
      %p144 = por %p142, %p143
      %p145 = scmp.ne.s32.totalorder %s136, %s137
      %p146 = scmp.eq.s32.totalorder %s21, 0
      %p147 = por %p145, %p146
      %p148 = scmp.ne.s32.totalorder %s136, %s137
      %p149 = scmp.eq.s32.totalorder %s22, 1
      %p150 = por %p148, %p149
      %p152 = scmp.ne.s32.totalorder %s137, %s151
      %p153 = scmp.eq.s32.totalorder %s22, 0
      %p154 = por %p152, %p153
      %s156 = sadd.s32 %s155, 1
      %p159 = scmp.eq.s32.totalorder %s16, 1
      %p160 = scmp.ne.s32.totalorder %s155, %s157
      %p161 = scmp.eq.s32.totalorder %s16, 0
      %p162 = por %p160, %p161
      %p163 = scmp.ne.s32.totalorder %s155, %s157
      %p164 = scmp.eq.s32.totalorder %s21, 1
      %p165 = por %p163, %p164
      %p166 = scmp.ne.s32.totalorder %s157, %s158
      %p167 = scmp.eq.s32.totalorder %s21, 0
      %p168 = por %p166, %p167
      %p169 = scmp.ne.s32.totalorder %s157, %s158
      %p170 = scmp.eq.s32.totalorder %s22, 1
      %p171 = por %p169, %p170
      %p173 = scmp.ne.s32.totalorder %s158, %s172
      %p174 = scmp.eq.s32.totalorder %s22, 0
      %p175 = por %p173, %p174
      %s176 = ssub.s32 %s16, %s23
      %p177 = scmp.eq.s32.totalorder %s176, 0
      %s179 = sadd.s32 %s178, 1
      %s180 = scalar_select %p177, %s178, %s179
      %p183 = pneg %p177
      %p184 = scmp.eq.s32.totalorder %s16, 1
      %p185 = por %p183, %p184
      %p186 = scmp.ne.s32.totalorder %s178, %s181
      %p187 = scmp.eq.s32.totalorder %s16, 0
      %p188 = por %p186, %p187
      %p189 = scmp.ne.s32.totalorder %s178, %s181
      %p190 = scmp.eq.s32.totalorder %s21, 1
      %p191 = por %p189, %p190
      %p192 = scmp.ne.s32.totalorder %s181, %s182
      %p193 = scmp.eq.s32.totalorder %s21, 0
      %p194 = por %p192, %p193
      %p195 = scmp.ne.s32.totalorder %s181, %s182
      %p196 = scmp.eq.s32.totalorder %s22, 1
      %p197 = por %p195, %p196
      %p199 = scmp.ne.s32.totalorder %s182, %s198
      %p200 = scmp.eq.s32.totalorder %s22, 0
      %p201 = por %p199, %p200
      %p202 = scmp.le.s32.totalorder 1, %s16
      %p203 = scmp.lt.s32.totalorder %s16, 3
      %p204 = pnand %p202, %p203
      %p205 = pneg %p204
      // Predicated region
      $region9: #{encoder_layer_forward.7} parent=5 // pred_check
        _
      $region10: #{encoder_layer_forward.7} parent=5 // pred_check_branch
        %207 = sbr.rel (%p204) target = $region12
      $region11: #{encoder_layer_forward.7} parent=5 // pred_region
        %s208 = ssub.s32 %s16, 1
        // Predicated region
        $region13: #{encoder_layer_forward.7} parent=11 // pred_check
          %p209 = pneg %p63
        $region14: #{encoder_layer_forward.7} parent=11 // pred_check_branch
          %211 = sbr.rel (%p209) target = $region16
        $region15: #{encoder_layer_forward.7} parent=11 // pred_region
          _
        $region16: #{encoder_layer_forward.7} parent=11 // pred_fallthru
          _
        // Predicated region
        $region17: #{encoder_layer_forward.7} parent=11 // pred_check
          %p212 = pneg %p84
        $region18: #{encoder_layer_forward.7} parent=11 // pred_check_branch
          %214 = sbr.rel (%p212) target = $region20
        $region19: #{encoder_layer_forward.7} parent=11 // pred_region
          _
        $region20: #{encoder_layer_forward.7} parent=11 // pred_fallthru
          _
        // Predicated region
        $region21: #{encoder_layer_forward.7} parent=11 // pred_check
          %p215 = pneg %p105
        $region22: #{encoder_layer_forward.7} parent=11 // pred_check_branch
          %217 = sbr.rel (%p215) target = $region24
        $region23: #{encoder_layer_forward.7} parent=11 // pred_region
          _
        $region24: #{encoder_layer_forward.7} parent=11 // pred_fallthru
          _
        // Predicated region
        $region25: #{encoder_layer_forward.7} parent=11 // pred_check
          %p218 = pneg %p126
        $region26: #{encoder_layer_forward.7} parent=11 // pred_check_branch
          %220 = sbr.rel (%p218) target = $region28
        $region27: #{encoder_layer_forward.7} parent=11 // pred_region
          _
        $region28: #{encoder_layer_forward.7} parent=11 // pred_fallthru
          _
        // Predicated region
        $region29: #{encoder_layer_forward.7} parent=11 // pred_check
          %p221 = pneg %p147
        $region30: #{encoder_layer_forward.7} parent=11 // pred_check_branch
          %223 = sbr.rel (%p221) target = $region32
        $region31: #{encoder_layer_forward.7} parent=11 // pred_region
          _
        $region32: #{encoder_layer_forward.7} parent=11 // pred_fallthru
          _
        // Predicated region
        $region33: #{encoder_layer_forward.7} parent=11 // pred_check
          %p224 = pneg %p168
        $region34: #{encoder_layer_forward.7} parent=11 // pred_check_branch
          %226 = sbr.rel (%p224) target = $region36
        $region35: #{encoder_layer_forward.7} parent=11 // pred_region
          _
        $region36: #{encoder_layer_forward.7} parent=11 // pred_fallthru
          _
      $region12: #{encoder_layer_forward.7} parent=5 // pred_fallthru
        _
      %p227 = scmp.lt.s32.totalorder %s16, 2
      // Predicated region
      $region37: #{encoder_layer_forward.7} parent=5 // pred_check
        %p228 = pneg %p227
      $region38: #{encoder_layer_forward.7} parent=5 // pred_check_branch
        %230 = sbr.rel (%p228) target = $region40
      $region39: #{encoder_layer_forward.7} parent=5 // pred_region
        // Predicated region
        $region41: #{encoder_layer_forward.7} parent=39 // pred_check
          %p231 = pneg %p36
        $region42: #{encoder_layer_forward.7} parent=39 // pred_check_branch
          %233 = sbr.rel (%p231) target = $region44
        $region43: #{encoder_layer_forward.7} parent=39 // pred_region
          %p234 = scmp.lt.s32.totalorder %s16, 1
          %s235 = scalar_select %p234, %s16, 1
          %s236 = smul.addr %s235, 8
          %s237 = scalar_lea.vmem %s0, %s236
        $region44: #{encoder_layer_forward.7} parent=39 // pred_fallthru
          _
      $region40: #{encoder_layer_forward.7} parent=5 // pred_fallthru
        _
      %p238 = scmp.le.s32.totalorder 1, %s16
      %p239 = scmp.lt.s32.totalorder %s16, 3
      %p240 = pnand %p238, %p239
      %p241 = pneg %p240
      // Predicated region
      $region45: #{encoder_layer_forward.7} parent=5 // pred_check
        _
      $region46: #{encoder_layer_forward.7} parent=5 // pred_check_branch
        %243 = sbr.rel (%p240) target = $region48
      $region47: #{encoder_layer_forward.7} parent=5 // pred_region
        %s244 = ssub.s32 %s16, 1
        %p245 = scmp.lt.s32.totalorder %s21, 1
        %s246 = scalar_select %p245, %s21, 1
        %s247 = smul.addr %s246, 8
        %s248 = scalar_lea.vmem %s0, %s247
        %p249 = pneg %p42
        %p250 = pneg %p39
        %p251 = pneg %p63
        %p252 = pneg %p60
        %p253 = pneg %p84
        %p254 = pneg %p81
        %p255 = pneg %p105
        %p256 = pneg %p102
        %p257 = pneg %p126
        %p258 = pneg %p123
        %p259 = pneg %p147
        %p260 = pneg %p144
        %p261 = pneg %p168
        %p262 = pneg %p165
        %p263 = pneg %p194
        %p264 = pneg %p191
        %s265 = sand.u32 %s181, 1
        %s266 = scalar_lea.sflag [#allocation3], %s265
        %s267 = sand.u32 %s181, 1
        %s268 = smul.addr %s267, 8
        %s269 = scalar_lea.vmem [#allocation2], %s268
        %p270 = scmp.lt.s32.totalorder %s21, 1
        %s271 = scalar_select %p270, %s21, 1
        %s272 = smul.addr %s271, 8
        %s273 = scalar_lea.vmem %s0, %s272
        %v274 = vld [vmem:[%s273] sm:$0xff]
        %v275 = vpack.c.bf16 %v274, %v274
        %v276 = vld [vmem:[%s1] sm:$0xff]
        %v277 = vld [vmem:[%s1 + $0x8] sm:$0xff]
        %v278 = vld [vmem:[%s1 + $0x10] sm:$0xff]
        %v279 = vld [vmem:[%s1 + $0x18] sm:$0xff]
        %v280 = vld [vmem:[%s1 + $0x20] sm:$0xff]
        %v281 = vld [vmem:[%s1 + $0x28] sm:$0xff]
        %v282 = vld [vmem:[%s1 + $0x30] sm:$0xff]
        %v283 = vld [vmem:[%s1 + $0x38] sm:$0xff]
        %v284 = vld [vmem:[%s1 + $0x40] sm:$0xff]
        %v285 = vld [vmem:[%s1 + $0x48] sm:$0xff]
        %v286 = vld [vmem:[%s1 + $0x50] sm:$0xff]
        %v287 = vld [vmem:[%s1 + $0x58] sm:$0xff]
        %v288 = vld [vmem:[%s1 + $0x60] sm:$0xff]
        %v289 = vld [vmem:[%s1 + $0x68] sm:$0xff]
        %v290 = vld [vmem:[%s1 + $0x70] sm:$0xff]
        %v291 = vld [vmem:[%s1 + $0x78] sm:$0xff]
        %v292 = vld [vmem:[%s1 + $0x80] sm:$0xff]
        %v293 = vld [vmem:[%s1 + $0x88] sm:$0xff]
        %v294 = vld [vmem:[%s1 + $0x90] sm:$0xff]
        %v295 = vld [vmem:[%s1 + $0x98] sm:$0xff]
        %v296 = vld [vmem:[%s1 + $0xa0] sm:$0xff]
        %v297 = vld [vmem:[%s1 + $0xa8] sm:$0xff]
        %v298 = vld [vmem:[%s1 + $0xb0] sm:$0xff]
        %v299 = vld [vmem:[%s1 + $0xb8] sm:$0xff]
        %v300 = vld [vmem:[%s1 + $0xc0] sm:$0xff]
        %v301 = vld [vmem:[%s1 + $0xc8] sm:$0xff]
        %v302 = vld [vmem:[%s1 + $0xd0] sm:$0xff]
        %v303 = vld [vmem:[%s1 + $0xd8] sm:$0xff]
        %v304 = vld [vmem:[%s1 + $0xe0] sm:$0xff]
        %v305 = vld [vmem:[%s1 + $0xe8] sm:$0xff]
        %v306 = vld [vmem:[%s1 + $0xf0] sm:$0xff]
        %v307 = vld [vmem:[%s1 + $0xf8] sm:$0xff]
        %v308 = vpack.c.bf16 %v278, %v276
        %v309 = vpack.c.bf16 %v279, %v277
        %v310 = vpack.c.bf16 %v282, %v280
        %v311 = vpack.c.bf16 %v283, %v281
        %v312 = vpack.c.bf16 %v286, %v284
        %v313 = vpack.c.bf16 %v287, %v285
        %v314 = vpack.c.bf16 %v290, %v288
        %v315 = vpack.c.bf16 %v291, %v289
        %v316 = vpack.c.bf16 %v294, %v292
        %v317 = vpack.c.bf16 %v295, %v293
        %v318 = vpack.c.bf16 %v298, %v296
        %v319 = vpack.c.bf16 %v299, %v297
        %v320 = vpack.c.bf16 %v302, %v300
        %v321 = vpack.c.bf16 %v303, %v301
        %v322 = vpack.c.bf16 %v306, %v304
        %v323 = vpack.c.bf16 %v307, %v305
        %v324 = vld [vmem:[%s3] sm:$0xff]
        %v325 = vld [vmem:[%s3 + $0x8] sm:$0xff]
        %v326 = vld [vmem:[%s3 + $0x10] sm:$0xff]
        %v327 = vld [vmem:[%s3 + $0x18] sm:$0xff]
        %v328 = vld [vmem:[%s3 + $0x20] sm:$0xff]
        %v329 = vld [vmem:[%s3 + $0x28] sm:$0xff]
        %v330 = vld [vmem:[%s3 + $0x30] sm:$0xff]
        %v331 = vld [vmem:[%s3 + $0x38] sm:$0xff]
        %v332 = vld [vmem:[%s3 + $0x40] sm:$0xff]
        %v333 = vld [vmem:[%s3 + $0x48] sm:$0xff]
        %v334 = vld [vmem:[%s3 + $0x50] sm:$0xff]
        %v335 = vld [vmem:[%s3 + $0x58] sm:$0xff]
        %v336 = vld [vmem:[%s3 + $0x60] sm:$0xff]
        %v337 = vld [vmem:[%s3 + $0x68] sm:$0xff]
        %v338 = vld [vmem:[%s3 + $0x70] sm:$0xff]
        %v339 = vld [vmem:[%s3 + $0x78] sm:$0xff]
        %v340 = vld [vmem:[%s3 + $0x80] sm:$0xff]
        %v341 = vld [vmem:[%s3 + $0x88] sm:$0xff]
        %v342 = vld [vmem:[%s3 + $0x90] sm:$0xff]
        %v343 = vld [vmem:[%s3 + $0x98] sm:$0xff]
        %v344 = vld [vmem:[%s3 + $0xa0] sm:$0xff]
        %v345 = vld [vmem:[%s3 + $0xa8] sm:$0xff]
        %v346 = vld [vmem:[%s3 + $0xb0] sm:$0xff]
        %v347 = vld [vmem:[%s3 + $0xb8] sm:$0xff]
        %v348 = vld [vmem:[%s3 + $0xc0] sm:$0xff]
        %v349 = vld [vmem:[%s3 + $0xc8] sm:$0xff]
        %v350 = vld [vmem:[%s3 + $0xd0] sm:$0xff]
        %v351 = vld [vmem:[%s3 + $0xd8] sm:$0xff]
        %v352 = vld [vmem:[%s3 + $0xe0] sm:$0xff]
        %v353 = vld [vmem:[%s3 + $0xe8] sm:$0xff]
        %v354 = vld [vmem:[%s3 + $0xf0] sm:$0xff]
        %v355 = vld [vmem:[%s3 + $0xf8] sm:$0xff]
        %v356 = vpack.c.bf16 %v325, %v324
        %v357 = vpack.c.bf16 %v327, %v326
        %v358 = vpack.c.bf16 %v329, %v328
        %v359 = vpack.c.bf16 %v331, %v330
        %v360 = vpack.c.bf16 %v333, %v332
        %v361 = vpack.c.bf16 %v335, %v334
        %v362 = vpack.c.bf16 %v337, %v336
        %v363 = vpack.c.bf16 %v339, %v338
        %v364 = vpack.c.bf16 %v341, %v340
        %v365 = vpack.c.bf16 %v343, %v342
        %v366 = vpack.c.bf16 %v345, %v344
        %v367 = vpack.c.bf16 %v347, %v346
        %v368 = vpack.c.bf16 %v349, %v348
        %v369 = vpack.c.bf16 %v351, %v350
        %v370 = vpack.c.bf16 %v353, %v352
        %v371 = vpack.c.bf16 %v355, %v354
        %v372 = vld [vmem:[%s2] sm:$0x3]
        %v374 = vperm.slane %v372, 0
        %v375 = vperm.slane %v372, 1
        %378 = vmatpush.bf16.msra.mxu0 %v322
        %379 = vmatpush.bf16.msra.mxu0 %v320
        %380 = vmatpush.bf16.msra.mxu0 %v318
        %381 = vmatpush.bf16.msra.mxu0 %v316
        %382 = vmatpush.bf16.msra.mxu0 %v314
        %383 = vmatpush.bf16.msra.mxu0 %v312
        %384 = vmatpush.bf16.msra.mxu0 %v310
        %385 = vmatpush.bf16.msra.mxu0 %v308
        %386 = vmatmul.bf16.gmra.mxu0 %v275
        %v387 = vpop.f32.mrf.mxu0
        %v388 = vadd.f32 %v374, %v387
        %v389 = vpop.f32.mrf.mxu0
        %390 = vdwg.mxu0
        %391 = vmatpush.bf16.msra.mxu0 %v323
        %392 = vmatpush.bf16.msra.mxu0 %v321
        %393 = vmatpush.bf16.msra.mxu0 %v319
        %394 = vmatpush.bf16.msra.mxu0 %v317
        %395 = vmatpush.bf16.msra.mxu0 %v315
        %396 = vmatpush.bf16.msra.mxu0 %v313
        %397 = vmatpush.bf16.msra.mxu0 %v311
        %398 = vmatpush.bf16.msra.mxu0 %v309
        %399 = vmatmul.bf16.gmra.mxu0 %v275
        %v400 = vpop.f32.mrf.mxu0
        %v401 = vadd.f32 %v375, %v400
        %v402 = vpop.f32.mrf.mxu0
        %403 = vdwg.mxu0
        %v404 = vmax.f32 %v388, 0.0
        %v405 = vmax.f32 %v401, 0.0
        %v406 = vpack.c.bf16 %v404, %v404
        %v407 = vpack.c.bf16 %v405, %v405
        %v408 = vld [vmem:[%s4] sm:$0x1]
        %v410 = vperm.slane %v408, 0
        %412 = vmatpush.bf16.msra.mxu0 %v363
        %413 = vmatpush.bf16.msra.mxu0 %v362
        %414 = vmatpush.bf16.msra.mxu0 %v361
        %415 = vmatpush.bf16.msra.mxu0 %v360
        %416 = vmatpush.bf16.msra.mxu0 %v359
        %417 = vmatpush.bf16.msra.mxu0 %v358
        %418 = vmatpush.bf16.msra.mxu0 %v357
        %419 = vmatpush.bf16.msra.mxu0 %v356
        %420 = vmatmul.bf16.gmra.mxu0 %v406
        %v421 = vpop.f32.mrf.mxu0
        %v422 = vadd.f32 %v410, %v421
        %v423 = vpop.f32.mrf.mxu0
        %424 = vdwg.mxu0
        %425 = vmatpush.bf16.msra.mxu0 %v371
        %426 = vmatpush.bf16.msra.mxu0 %v370
        %427 = vmatpush.bf16.msra.mxu0 %v369
        %428 = vmatpush.bf16.msra.mxu0 %v368
        %429 = vmatpush.bf16.msra.mxu0 %v367
        %430 = vmatpush.bf16.msra.mxu0 %v366
        %431 = vmatpush.bf16.msra.mxu0 %v365
        %432 = vmatpush.bf16.msra.mxu0 %v364
        %433 = vmatmul.bf16.gmra.mxu0 %v407
        %v434 = vpop.f32.mrf.mxu0
        %v435 = vadd.f32 %v422, %v434
        %v436 = vpop.f32.mrf.mxu0
        %437 = vdwg.mxu0
        %v438 = vadd.f32 %v435, %v274
        %v439 = vld [vmem:[%s5] sm:$0x1]
        %v440 = vld [vmem:[%s6] sm:$0x1]
        %441 = vadd.xlane.f32.xlu0 %v438
        %v442 = vpop.xlane.xlu0 %441
        %v443 = vrcp.pop 128.0
        %v444 = vmul.f32 128.0, %v443
        %v445 = vsub.f32 1.0, %v444
        %v446 = vmul.f32 %v443, %v445
        %v447 = vadd.f32 %v443, %v446
        %vm448 = vweird.f32 %v443
        %v449 = vsel %vm448, %v443, %v447
        %v450 = vmul.f32 %v442, %v449
        %v451 = vsub.f32 %v438, %v450
        %v452 = vmul.f32 %v451, %v451
        %453 = vadd.xlane.f32.xlu0 %v452
        %v454 = vpop.xlane.xlu0 %453
        %v455 = vmul.f32 %v454, %v449
        %v456 = vadd.f32 %v455, 1e-12
        %v457 = vrsqrt.pop %v456
        %v458 = vmul.f32 %v457, %v456
        %v459 = vmul.f32 %v458, %v457
        %v460 = vmul.f32 0.5, %v459
        %v461 = vsub.f32 1.5, %v460
        %v462 = vmul.f32 %v457, %v461
        %vm463 = vweird.f32 %v456
        %vm464 = vweird.f32 %v457
        %vm465 = vmor %vm463, %vm464
        %v466 = vsel %vm465, %v457, %v462
        %v467 = vmul.f32 %v451, %v466
        %v469 = vperm.slane %v439, 0
        %v471 = vmul.f32 %v469, %v467
        %v473 = vperm.slane %v440, 0
        %v475 = vadd.f32 %v471, %v473
        %476 = vst [vmem:[%s269] sm:$0xff] %v475
        %s477 = sand.u32 %s181, 1
        %s478 = scalar_lea.sflag [#allocation3], %s477
        %s479 = sand.u32 %s181, 1
        %s480 = smul.addr %s479, 8
        %s481 = scalar_lea.vmem [#allocation2], %s480
        // Predicated region
        $region49: #{encoder_layer_forward.7} parent=47 // pred_check
          %p482 = pneg %p191
        $region50: #{encoder_layer_forward.7} parent=47 // pred_check_branch
          %484 = sbr.rel (%p482) target = $region52
        $region51: #{encoder_layer_forward.7} parent=47 // pred_region
          %486 = vsyncadd %s478, 0
          %s487 = smul.addr %s21, 8
          %s488 = scalar_lea.hbm %s7, %s487
          %s490 = sshll.u32 %s481, 4
          %s491 = int_to_ptr.vmem [resolvable:$true] %s490
          %s492 = sshll.u32 %s488, 4
          %s493 = int_to_ptr.hbm [resolvable:$true] %s492
          %495 = dma.vmem_to_hbm [thread:$0]  %s491, 128, %s493, %s478
        $region52: #{encoder_layer_forward.7} parent=47 // pred_fallthru
          _
      $region48: #{encoder_layer_forward.7} parent=5 // pred_fallthru
        _
      %p496 = scmp.le.s32.totalorder 2, %s16
      // Predicated region
      $region53: #{encoder_layer_forward.7} parent=5 // pred_check
        %p497 = pneg %p496
      $region54: #{encoder_layer_forward.7} parent=5 // pred_check_branch
        %499 = sbr.rel (%p497) target = $region56
      $region55: #{encoder_layer_forward.7} parent=5 // pred_region
        %s500 = ssub.s32 %s16, 2
        // Predicated region
        $region57: #{encoder_layer_forward.7} parent=55 // pred_check
          %p501 = pneg %p197
        $region58: #{encoder_layer_forward.7} parent=55 // pred_check_branch
          %503 = sbr.rel (%p501) target = $region60
        $region59: #{encoder_layer_forward.7} parent=55 // pred_region
          %s504 = sand.u32 %s182, 1
          %s505 = scalar_lea.sflag [#allocation3], %s504
          %s506 = sand.u32 %s182, 1
          %s507 = smul.addr %s506, 8
          %s508 = scalar_lea.vmem [#allocation2], %s507
          %510 = dma.done %s505, 128
        $region60: #{encoder_layer_forward.7} parent=55 // pred_fallthru
          _
      $region56: #{encoder_layer_forward.7} parent=5 // pred_fallthru
        _
    $region6: #{encoder_layer_forward.7} parent=1 // loop_footer
      %s20 = sadd.s32 1, %s16
    $region7: #{encoder_layer_forward.7} parent=1 // loop_footer_branch
      %15 = sbr.rel target = $region3
    $region8: #{encoder_layer_forward.7} parent=1 // loop_exit
      _
    %511 = vsyncpa [#allocation3], 1
    %s512 = scalar_lea.sflag [#allocation3], 1
    %513 = vsyncpa %s512, 1

</llo_original>
